<compile_context>
chip_gen: v7x
topology: tpu7x:2x2x1
jax: 0.10.0
libtpu: 0.0.40
codegen_flags: <defaults>
</compile_context>

<pallas_src>
import functools

import jax
import jax.numpy as jnp
from jax.experimental import pallas as pl
from jax.experimental.pallas import tpu as pltpu


def _round_up(x, m):
    return (x + m - 1) // m * m


def _patch_embed_kernel(p_ref, w_ref, b_ref, o_ref):
    # One row tile of bf16 patches x resident bf16 weight on the MXU with f32
    # accumulation; fused f32 bias add on the VPU; cast to the output dtype.
    acc = jnp.dot(p_ref[...], w_ref[...], preferred_element_type=jnp.float32)
    o_ref[...] = (acc + b_ref[...]).astype(o_ref.dtype)


def _vmem_bytes(tn, k, e, out_itemsize):
    # Streamed operands (patch rows, output tile) are double-buffered by the
    # pipeline; the grid-invariant weight/bias are counted once.
    streamed = 2 * (tn * k * 2 + tn * e * out_itemsize)   # bf16 patches + out tile
    resident = k * e * 2 + e * 4                          # bf16 weight + f32 bias
    return streamed + resident


def _choose_row_tile(n, k, e, out_itemsize, budget):
    if n <= 256:
        return n  # block == full (second-minor) dim -> always a legal BlockSpec
    # Prefer multiples of 256 (keeps every vmatmul edge fully populated on the
    # 256x256 MXUs of v6e/v7x; also a multiple of 16 for bf16 sublane packing),
    # and cap TN so the single "parallel" grid axis keeps >= 2 steps for the
    # two v7x TensorCores.
    tn = min(1024, max(256, _round_up(pl.cdiv(n, 2), 256)))
    while tn > 256 and _vmem_bytes(tn, k, e, out_itemsize) > budget:
        tn -= 256
    while tn > 16 and _vmem_bytes(tn, k, e, out_itemsize) > budget:
        tn = _round_up(max(tn // 2, 16), 16)
    return tn


@functools.partial(jax.jit, static_argnames=("patch", "out_dtype"))
def patch_embed_2pt5d(x, weight, bias, *, patch=16, out_dtype=None):
    """x: (B, C, H, W), C == 3.  weight: (E, C, P, P, 1), bias: (E,).

    Returns (B, H // patch, W // patch, E), matching PatchEmbed2pt5D.forward.
    """
    B, C, H, W = x.shape
    assert C == 3, "forward() only supports C == 3 (depth == 1 after chunk/stack)"
    assert H % patch == 0 and W % patch == 0
    gh, gw = H // patch, W // patch
    E = weight.shape[0]
    K = C * patch * patch
    N = B * gh * gw
    out_dtype = jnp.dtype(out_dtype) if out_dtype is not None else x.dtype

    # ---- wrapper-side layout prep (XLA fuses the casts with the transposes) ----
    # Patchify in bf16: (B,C,gh,P,gw,P) -> (B,gh,gw,C,P,P) -> (N, K).
    # The (c, kh, kw) flattening order matches the Conv3d weight flattening.
    xp = x.astype(jnp.bfloat16).reshape(B, C, gh, patch, gw, patch)
    xp = xp.transpose(0, 2, 4, 1, 3, 5).reshape(N, K)

    # Conv3d weight (E, C, kh, kw, 1) -> (K, E) in bf16; bias stays f32.
    wf = weight[:, :, :, :, 0].astype(jnp.bfloat16).reshape(E, K).T
    bf = bias.astype(jnp.float32).reshape(1, E)

    out_itemsize = jnp.dtype(out_dtype).itemsize
    budget = 24 * 1024 * 1024  # comfortably under every generation's scoped default
    TN = _choose_row_tile(N, K, E, out_itemsize, budget)

    out = pl.pallas_call(
        _patch_embed_kernel,
        out_shape=jax.ShapeDtypeStruct((N, E), out_dtype),
        grid_spec=pltpu.PrefetchScalarGridSpec(
            num_scalar_prefetch=0,
            grid=(pl.cdiv(N, TN),),
            in_specs=[
                pl.BlockSpec((TN, K), lambda i: (i, 0)),   # patch rows (streamed)
                pl.BlockSpec((K, E), lambda i: (0, 0)),    # weight (grid-invariant)
                pl.BlockSpec((1, E), lambda i: (0, 0)),    # bias (grid-invariant)
            ],
            out_specs=pl.BlockSpec((TN, E), lambda i: (i, 0)),
        ),
        compiler_params=pltpu.CompilerParams(
            dimension_semantics=("parallel",),
        ),
    )(xp, wf, bf)

    return out.reshape(B, gh, gw, E)


if __name__ == "__main__":
    # Shapes consistent with the module: C = in_chans = 3, spatial a multiple of
    # the 16x16 patch.  EMBED deliberately not a multiple of 128 to exercise the
    # unpadded (half-masked) lane store.  N = 2*16*16 = 512 -> TN = 256, grid 2.
    B, C, H, W = 2, 3, 256, 256
    PATCH = 16
    EMBED = 192

    key = jax.random.PRNGKey(0)
    kx, kw, kb = jax.random.split(key, 3)

    x = jax.random.normal(kx, (B, C, H, W), dtype=jnp.float32)
    fan_in = C * PATCH * PATCH
    bound = 1.0 / jnp.sqrt(fan_in)
    weight = jax.random.uniform(
        kw, (EMBED, C, PATCH, PATCH, 1), dtype=jnp.float32, minval=-bound, maxval=bound
    )
    bias = jax.random.uniform(
        kb, (EMBED,), dtype=jnp.float32, minval=-bound, maxval=bound
    )

    out = patch_embed_2pt5d(x, weight, bias, patch=PATCH)
    out = jax.block_until_ready(out)
    assert out.shape == (B, H // PATCH, W // PATCH, EMBED), out.shape

    # Pure-JAX reference using the same bf16-rounded operands + f32 accumulation.
    gh, gw = H // PATCH, W // PATCH
    Kdim = C * PATCH * PATCH
    xb = x.astype(jnp.bfloat16).astype(jnp.float32)
    xb = xb.reshape(B, C, gh, PATCH, gw, PATCH).transpose(0, 2, 4, 1, 3, 5)
    xb = xb.reshape(-1, Kdim)
    wb = weight[:, :, :, :, 0].astype(jnp.bfloat16).astype(jnp.float32).reshape(EMBED, Kdim)
    ref = jnp.dot(xb, wb.T, precision=jax.lax.Precision.HIGHEST) + bias
    ref = ref.reshape(B, gh, gw, EMBED)
    assert jnp.allclose(out, ref, atol=1e-2, rtol=1e-2), float(jnp.max(jnp.abs(out - ref)))

    print("KERNEL_OK")
</pallas_src>

<mosaic_0001>
module attributes {stable_mosaic.version = 11 : i64} {
  func.func @_patch_embed_kernel(%arg0: i32, %arg1: memref<256x768xbf16, #tpu.memory_space<vmem>>, %arg2: memref<768x192xbf16, #tpu.memory_space<vmem>>, %arg3: memref<1x192xf32, #tpu.memory_space<vmem>>, %arg4: memref<256x192xf32, #tpu.memory_space<vmem>>) attributes {dimension_semantics = [#tpu.dimension_semantics<parallel>], iteration_bounds = array<i64: 2>, scalar_prefetch = 0 : i64, scratch_operands = 0 : i64, tpu.core_type = #tpu.core_type<tc>, window_params = [{transform_indices = @transform_0, window_bounds = array<i64: 256, 768>}, {pipeline_mode = #tpu.pipeline_mode<synchronous>, transform_indices = @transform_1, window_bounds = array<i64: 768, 192>}, {pipeline_mode = #tpu.pipeline_mode<synchronous>, transform_indices = @transform_2, window_bounds = array<i64: 1, 192>}, {transform_indices = @transform_3, window_bounds = array<i64: 256, 192>}]} {
    %c0 = arith.constant 0 : index
    %c0_0 = arith.constant 0 : index
    %0 = vector.load %arg1[%c0, %c0_0] : memref<256x768xbf16, #tpu.memory_space<vmem>>, vector<256x768xbf16>
    %c0_1 = arith.constant 0 : index
    %c0_2 = arith.constant 0 : index
    %1 = vector.load %arg2[%c0_1, %c0_2] : memref<768x192xbf16, #tpu.memory_space<vmem>>, vector<768x192xbf16>
    %cst = arith.constant dense<0.000000e+00> : vector<256x192xf32>
    %2 = tpu.matmul %0, %1, %cst {dimension_numbers = #tpu.dot_dimension_numbers<[1], [0], [0], [1], [0, 0, 1, 1], [], []>} : vector<256x768xbf16>, vector<768x192xbf16>, vector<256x192xf32> -> vector<256x192xf32>
    %c0_3 = arith.constant 0 : index
    %c0_4 = arith.constant 0 : index
    %3 = vector.load %arg3[%c0_3, %c0_4] : memref<1x192xf32, #tpu.memory_space<vmem>>, vector<1x192xf32>
    %4 = vector.broadcast %3 : vector<1x192xf32> to vector<256x192xf32>
    %5 = arith.addf %2, %4 : vector<256x192xf32>
    %c0_5 = arith.constant 0 : index
    %c0_6 = arith.constant 0 : index
    %6 = vector.load %arg4[%c0_5, %c0_6] : memref<256x192xf32, #tpu.memory_space<vmem>>, vector<256x192xf32>
    tpu.vector_store %arg4[%c0_5, %c0_6], %5 {strides = array<i32>} : memref<256x192xf32, #tpu.memory_space<vmem>>, vector<256x192xf32>,
    return
  }
  func.func @transform_0(%arg0: i32) -> (i32, i32) {
    %c0_i32 = arith.constant 0 : i32
    %c0_i32_0 = arith.constant 0 : i32
    return %arg0, %c0_i32 : i32, i32
  }
  func.func @transform_1(%arg0: i32) -> (i32, i32) {
    %c0_i32 = arith.constant 0 : i32
    %c0_i32_0 = arith.constant 0 : i32
    %c0_i32_1 = arith.constant 0 : i32
    return %c0_i32, %c0_i32_0 : i32, i32
  }
  func.func @transform_2(%arg0: i32) -> (i32, i32) {
    %c0_i32 = arith.constant 0 : i32
    %c0_i32_0 = arith.constant 0 : i32
    %c0_i32_1 = arith.constant 0 : i32
    return %c0_i32, %c0_i32_0 : i32, i32
  }
  func.func @transform_3(%arg0: i32) -> (i32, i32) {
    %c0_i32 = arith.constant 0 : i32
    %c0_i32_0 = arith.constant 0 : i32
    return %arg0, %c0_i32 : i32, i32
  }
}

</mosaic_0001>

<llo_original>
// kernel: patch_embed_2pt5d.1
$region0: #{patch_embed_2pt5d.1}
  #allocation0 [shape = 'u32[]', space=smem, size = 0x4, offset = 0x4, fixed_abs, tag = 'smem constant byte address 0x4 - core index']
  #allocation1 [shape = 'u32[144,128]{1,0:T(1,128)}', space=vmem, size = 0x12000, scoped, tag = 'internal scratch']
  %s0 = inlined_call_operand.vmem [shape: bf16[512,768], index: 0, kind: input, shape index: {}]
  %s1 = inlined_call_operand.vmem [shape: bf16[768,192], index: 1, kind: input, shape index: {}]
  %s2 = inlined_call_operand.vmem [shape: f32[1,192], index: 2, kind: input, shape index: {}]
  %s3 = inlined_call_operand.hbm [shape: f32[512,192], index: 3, kind: output, shape index: {}]
  %s4 = sld [smem:[#allocation0]]
  $region45: #{patch_embed_2pt5d.1} parent=0
    _
  %s6 = ssub.s32 1, %s4
  %s7 = scalar_select 0, %s6, %s4
  $region1: #{patch_embed_2pt5d.1} parent=0
    #allocation2 [shape = 'u8[524288]{0}', space=vmem, size = 0x80000, scoped, tag = 'output window, operand 0']
    #allocation3 [shape = 's32[2]{0}', space=sflag, size = 0x8, scoped, tag = 'scoped memory for patch_embed_2pt5d.1']
    %8 = vsyncpa [#allocation3], 0
    %s9 = scalar_lea.sflag [#allocation3], 1
    %10 = vsyncpa %s9, 0
    loop: start=0, step=1, limit=4
    $region2: #{patch_embed_2pt5d.1} parent=1 // loop_pre_header
      _
    $region3: #{patch_embed_2pt5d.1} parent=1 // loop_header
      %s12 = sphi 0, %s16
      %p13 = scmp.ge.s32.totalorder %s12, 4
      %s22 = sphi 0, %s24
      %s25 = sphi 0, %s22
      %s26 = sphi 0, %s25
      %s42 = sphi 0, %s26
      %s46 = sphi 0, %s46
      %s48 = sphi 0, %s46
      %s49 = sphi 0, %s48
      %s63 = sphi 0, %s49
      %s67 = sphi 0, %s67
      %s69 = sphi 0, %s67
      %s70 = sphi 0, %s69
      %s84 = sphi 0, %s70
      %s90 = sphi 0, %s92
      %s93 = sphi 0, %s90
      %s94 = sphi 0, %s93
      %s110 = sphi 0, %s94
    $region4: #{patch_embed_2pt5d.1} parent=1 // loop_header_branch
      %15 = sbr.rel (%p13) target = $region8
    $region5: #{patch_embed_2pt5d.1} parent=1 // loop_body
      %s17 = ssub.s32 %s12, 1
      %s18 = ssub.s32 %s12, 2
      %s19 = sadd.s32 %s12, 1
      %s20 = ssub.s32 %s12, %s19
      %p21 = scmp.eq.s32.totalorder %s20, 0
      %s23 = sadd.s32 %s22, 1
      %s24 = scalar_select %p21, %s22, %s23
      %p27 = pneg %p21
      %p28 = scmp.eq.s32.totalorder %s12, 1
      %p29 = por %p27, %p28
      %p30 = scmp.ne.s32.totalorder %s22, %s25
      %p31 = scmp.eq.s32.totalorder %s12, 0
      %p32 = por %p30, %p31
      %p33 = scmp.ne.s32.totalorder %s22, %s25
      %p34 = scmp.eq.s32.totalorder %s17, 1
      %p35 = por %p33, %p34
      %p36 = scmp.ne.s32.totalorder %s25, %s26
      %p37 = scmp.eq.s32.totalorder %s17, 0
      %p38 = por %p36, %p37
      %p39 = scmp.ne.s32.totalorder %s25, %s26
      %p40 = scmp.eq.s32.totalorder %s18, 1
      %p41 = por %p39, %p40
      %p43 = scmp.ne.s32.totalorder %s26, %s42
      %p44 = scmp.eq.s32.totalorder %s18, 0
      %p45 = por %p43, %p44
      %s47 = sadd.s32 %s46, 1
      %p50 = scmp.eq.s32.totalorder %s12, 1
      %p51 = scmp.ne.s32.totalorder %s46, %s48
      %p52 = scmp.eq.s32.totalorder %s12, 0
      %p53 = por %p51, %p52
      %p54 = scmp.ne.s32.totalorder %s46, %s48
      %p55 = scmp.eq.s32.totalorder %s17, 1
      %p56 = por %p54, %p55
      %p57 = scmp.ne.s32.totalorder %s48, %s49
      %p58 = scmp.eq.s32.totalorder %s17, 0
      %p59 = por %p57, %p58
      %p60 = scmp.ne.s32.totalorder %s48, %s49
      %p61 = scmp.eq.s32.totalorder %s18, 1
      %p62 = por %p60, %p61
      %p64 = scmp.ne.s32.totalorder %s49, %s63
      %p65 = scmp.eq.s32.totalorder %s18, 0
      %p66 = por %p64, %p65
      %s68 = sadd.s32 %s67, 1
      %p71 = scmp.eq.s32.totalorder %s12, 1
      %p72 = scmp.ne.s32.totalorder %s67, %s69
      %p73 = scmp.eq.s32.totalorder %s12, 0
      %p74 = por %p72, %p73
      %p75 = scmp.ne.s32.totalorder %s67, %s69
      %p76 = scmp.eq.s32.totalorder %s17, 1
      %p77 = por %p75, %p76
      %p78 = scmp.ne.s32.totalorder %s69, %s70
      %p79 = scmp.eq.s32.totalorder %s17, 0
      %p80 = por %p78, %p79
      %p81 = scmp.ne.s32.totalorder %s69, %s70
      %p82 = scmp.eq.s32.totalorder %s18, 1
      %p83 = por %p81, %p82
      %p85 = scmp.ne.s32.totalorder %s70, %s84
      %p86 = scmp.eq.s32.totalorder %s18, 0
      %p87 = por %p85, %p86
      %s88 = ssub.s32 %s12, %s19
      %p89 = scmp.eq.s32.totalorder %s88, 0
      %s91 = sadd.s32 %s90, 1
      %s92 = scalar_select %p89, %s90, %s91
      %p95 = pneg %p89
      %p96 = scmp.eq.s32.totalorder %s12, 1
      %p97 = por %p95, %p96
      %p98 = scmp.ne.s32.totalorder %s90, %s93
      %p99 = scmp.eq.s32.totalorder %s12, 0
      %p100 = por %p98, %p99
      %p101 = scmp.ne.s32.totalorder %s90, %s93
      %p102 = scmp.eq.s32.totalorder %s17, 1
      %p103 = por %p101, %p102
      %p104 = scmp.ne.s32.totalorder %s93, %s94
      %p105 = scmp.eq.s32.totalorder %s17, 0
      %p106 = por %p104, %p105
      %p107 = scmp.ne.s32.totalorder %s93, %s94
      %p108 = scmp.eq.s32.totalorder %s18, 1
      %p109 = por %p107, %p108
      %p111 = scmp.ne.s32.totalorder %s94, %s110
      %p112 = scmp.eq.s32.totalorder %s18, 0
      %p113 = por %p111, %p112
      %p114 = scmp.le.s32.totalorder 1, %s12
      %p115 = scmp.lt.s32.totalorder %s12, 3
      %p116 = pnand %p114, %p115
      %p117 = pneg %p116
      // Predicated region
      $region9: #{patch_embed_2pt5d.1} parent=5 // pred_check
        _
      $region10: #{patch_embed_2pt5d.1} parent=5 // pred_check_branch
        %119 = sbr.rel (%p116) target = $region12
      $region11: #{patch_embed_2pt5d.1} parent=5 // pred_region
        %s120 = ssub.s32 %s12, 1
        // Predicated region
        $region13: #{patch_embed_2pt5d.1} parent=11 // pred_check
          %p121 = pneg %p59
        $region14: #{patch_embed_2pt5d.1} parent=11 // pred_check_branch
          %123 = sbr.rel (%p121) target = $region16
        $region15: #{patch_embed_2pt5d.1} parent=11 // pred_region
          _
        $region16: #{patch_embed_2pt5d.1} parent=11 // pred_fallthru
          _
        // Predicated region
        $region17: #{patch_embed_2pt5d.1} parent=11 // pred_check
          %p124 = pneg %p80
        $region18: #{patch_embed_2pt5d.1} parent=11 // pred_check_branch
          %126 = sbr.rel (%p124) target = $region20
        $region19: #{patch_embed_2pt5d.1} parent=11 // pred_region
          _
        $region20: #{patch_embed_2pt5d.1} parent=11 // pred_fallthru
          _
      $region12: #{patch_embed_2pt5d.1} parent=5 // pred_fallthru
        _
      %p127 = scmp.lt.s32.totalorder %s12, 2
      // Predicated region
      $region21: #{patch_embed_2pt5d.1} parent=5 // pred_check
        %p128 = pneg %p127
      $region22: #{patch_embed_2pt5d.1} parent=5 // pred_check_branch
        %130 = sbr.rel (%p128) target = $region24
      $region23: #{patch_embed_2pt5d.1} parent=5 // pred_region
        // Predicated region
        $region25: #{patch_embed_2pt5d.1} parent=23 // pred_check
          %p131 = pneg %p32
        $region26: #{patch_embed_2pt5d.1} parent=23 // pred_check_branch
          %133 = sbr.rel (%p131) target = $region28
        $region27: #{patch_embed_2pt5d.1} parent=23 // pred_region
          %s134 = smul.u32 32, %s12
          %p135 = scmp.lt.s32.totalorder %s134, 63
          %s136 = scalar_select %p135, %s134, 63
          %s137 = smul.addr %s136, 6
          %s138 = smul.addr %s137, 4
          %s139 = scalar_lea.vmem %s0, %s138
          %s140 = smul.u32 32, %s12
        $region28: #{patch_embed_2pt5d.1} parent=23 // pred_fallthru
          _
      $region24: #{patch_embed_2pt5d.1} parent=5 // pred_fallthru
        _
      %p141 = scmp.le.s32.totalorder 1, %s12
      %p142 = scmp.lt.s32.totalorder %s12, 3
      %p143 = pnand %p141, %p142
      %p144 = pneg %p143
      // Predicated region
      $region29: #{patch_embed_2pt5d.1} parent=5 // pred_check
        _
      $region30: #{patch_embed_2pt5d.1} parent=5 // pred_check_branch
        %146 = sbr.rel (%p143) target = $region32
      $region31: #{patch_embed_2pt5d.1} parent=5 // pred_region
        %s147 = ssub.s32 %s12, 1
        %s148 = smul.u32 32, %s17
        %p149 = scmp.lt.s32.totalorder %s148, 63
        %s150 = scalar_select %p149, %s148, 63
        %s151 = smul.addr %s150, 6
        %s152 = smul.addr %s151, 4
        %s153 = scalar_lea.vmem %s0, %s152
        %p154 = pneg %p38
        %p155 = pneg %p35
        %p156 = pneg %p59
        %p157 = pneg %p56
        %p158 = pneg %p80
        %p159 = pneg %p77
        %p160 = pneg %p106
        %p161 = pneg %p103
        %s162 = sand.u32 %s93, 1
        %s163 = scalar_lea.sflag [#allocation3], %s162
        %s164 = sand.u32 %s93, 1
        %s165 = smul.addr %s164, 512
        %s166 = scalar_lea.vmem [#allocation2], %s165
        %s167 = smul.u32 32, %s17
        %p168 = scmp.lt.s32.totalorder %s167, 63
        %s169 = scalar_select %p168, %s167, 63
        %s170 = smul.addr %s169, 6
        %s171 = smul.addr %s170, 4
        %s172 = scalar_lea.vmem %s0, %s171
        %s173 = smul.u32 32, %s17
        %s174 = smul.u32 32, %s17
        %v175 = vld [vmem:[%s172] sm:$0xff]
        %v176 = vld [vmem:[%s172 + $0x8] sm:$0xff]
        %v177 = vld [vmem:[%s172 + $0x10] sm:$0xff]
        %v178 = vld [vmem:[%s172 + $0x18] sm:$0xff]
        %v179 = vld [vmem:[%s172 + $0x20] sm:$0xff]
        %v180 = vld [vmem:[%s172 + $0x28] sm:$0xff]
        %v181 = vld [vmem:[%s172 + $0x30] sm:$0xff]
        %v182 = vld [vmem:[%s172 + $0x38] sm:$0xff]
        %v183 = vld [vmem:[%s172 + $0x40] sm:$0xff]
        %v184 = vld [vmem:[%s172 + $0x48] sm:$0xff]
        %v185 = vld [vmem:[%s172 + $0x50] sm:$0xff]
        %v186 = vld [vmem:[%s172 + $0x58] sm:$0xff]
        %v187 = vld [vmem:[%s172 + $0x60] sm:$0xff]
        %v188 = vld [vmem:[%s172 + $0x68] sm:$0xff]
        %v189 = vld [vmem:[%s172 + $0x70] sm:$0xff]
        %v190 = vld [vmem:[%s172 + $0x78] sm:$0xff]
        %v191 = vld [vmem:[%s172 + $0x80] sm:$0xff]
        %v192 = vld [vmem:[%s172 + $0x88] sm:$0xff]
        %v193 = vld [vmem:[%s172 + $0x90] sm:$0xff]
        %v194 = vld [vmem:[%s172 + $0x98] sm:$0xff]
        %v195 = vld [vmem:[%s172 + $0xa0] sm:$0xff]
        %v196 = vld [vmem:[%s172 + $0xa8] sm:$0xff]
        %v197 = vld [vmem:[%s172 + $0xb0] sm:$0xff]
        %v198 = vld [vmem:[%s172 + $0xb8] sm:$0xff]
        %v199 = vld [vmem:[%s172 + $0xc0] sm:$0xff]
        %v200 = vld [vmem:[%s172 + $0xc8] sm:$0xff]
        %v201 = vld [vmem:[%s172 + $0xd0] sm:$0xff]
        %v202 = vld [vmem:[%s172 + $0xd8] sm:$0xff]
        %v203 = vld [vmem:[%s172 + $0xe0] sm:$0xff]
        %v204 = vld [vmem:[%s172 + $0xe8] sm:$0xff]
        %v205 = vld [vmem:[%s172 + $0xf0] sm:$0xff]
        %v206 = vld [vmem:[%s172 + $0xf8] sm:$0xff]
        %v207 = vld [vmem:[%s172 + $0x100] sm:$0xff]
        %v208 = vld [vmem:[%s172 + $0x108] sm:$0xff]
        %v209 = vld [vmem:[%s172 + $0x110] sm:$0xff]
        %v210 = vld [vmem:[%s172 + $0x118] sm:$0xff]
        %v211 = vld [vmem:[%s172 + $0x120] sm:$0xff]
        %v212 = vld [vmem:[%s172 + $0x128] sm:$0xff]
        %v213 = vld [vmem:[%s172 + $0x130] sm:$0xff]
        %v214 = vld [vmem:[%s172 + $0x138] sm:$0xff]
        %v215 = vld [vmem:[%s172 + $0x140] sm:$0xff]
        %v216 = vld [vmem:[%s172 + $0x148] sm:$0xff]
        %v217 = vld [vmem:[%s172 + $0x150] sm:$0xff]
        %v218 = vld [vmem:[%s172 + $0x158] sm:$0xff]
        %v219 = vld [vmem:[%s172 + $0x160] sm:$0xff]
        %v220 = vld [vmem:[%s172 + $0x168] sm:$0xff]
        %v221 = vld [vmem:[%s172 + $0x170] sm:$0xff]
        %v222 = vld [vmem:[%s172 + $0x178] sm:$0xff]
        %v223 = vld [vmem:[%s172 + $0x180] sm:$0xff]
        %v224 = vld [vmem:[%s172 + $0x188] sm:$0xff]
        %v225 = vld [vmem:[%s172 + $0x190] sm:$0xff]
        %v226 = vld [vmem:[%s172 + $0x198] sm:$0xff]
        %v227 = vld [vmem:[%s172 + $0x1a0] sm:$0xff]
        %v228 = vld [vmem:[%s172 + $0x1a8] sm:$0xff]
        %v229 = vld [vmem:[%s172 + $0x1b0] sm:$0xff]
        %v230 = vld [vmem:[%s172 + $0x1b8] sm:$0xff]
        %v231 = vld [vmem:[%s172 + $0x1c0] sm:$0xff]
        %v232 = vld [vmem:[%s172 + $0x1c8] sm:$0xff]
        %v233 = vld [vmem:[%s172 + $0x1d0] sm:$0xff]
        %v234 = vld [vmem:[%s172 + $0x1d8] sm:$0xff]
        %v235 = vld [vmem:[%s172 + $0x1e0] sm:$0xff]
        %v236 = vld [vmem:[%s172 + $0x1e8] sm:$0xff]
        %v237 = vld [vmem:[%s172 + $0x1f0] sm:$0xff]
        %v238 = vld [vmem:[%s172 + $0x1f8] sm:$0xff]
        %v239 = vld [vmem:[%s172 + $0x200] sm:$0xff]
        %v240 = vld [vmem:[%s172 + $0x208] sm:$0xff]
        %v241 = vld [vmem:[%s172 + $0x210] sm:$0xff]
        %v242 = vld [vmem:[%s172 + $0x218] sm:$0xff]
        %v243 = vld [vmem:[%s172 + $0x220] sm:$0xff]
        %v244 = vld [vmem:[%s172 + $0x228] sm:$0xff]
        %v245 = vld [vmem:[%s172 + $0x230] sm:$0xff]
        %v246 = vld [vmem:[%s172 + $0x238] sm:$0xff]
        %v247 = vld [vmem:[%s172 + $0x240] sm:$0xff]
        %v248 = vld [vmem:[%s172 + $0x248] sm:$0xff]
        %v249 = vld [vmem:[%s172 + $0x250] sm:$0xff]
        %v250 = vld [vmem:[%s172 + $0x258] sm:$0xff]
        %v251 = vld [vmem:[%s172 + $0x260] sm:$0xff]
        %v252 = vld [vmem:[%s172 + $0x268] sm:$0xff]
        %v253 = vld [vmem:[%s172 + $0x270] sm:$0xff]
        %v254 = vld [vmem:[%s172 + $0x278] sm:$0xff]
        %v255 = vld [vmem:[%s172 + $0x280] sm:$0xff]
        %v256 = vld [vmem:[%s172 + $0x288] sm:$0xff]
        %v257 = vld [vmem:[%s172 + $0x290] sm:$0xff]
        %v258 = vld [vmem:[%s172 + $0x298] sm:$0xff]
        %v259 = vld [vmem:[%s172 + $0x2a0] sm:$0xff]
        %v260 = vld [vmem:[%s172 + $0x2a8] sm:$0xff]
        %v261 = vld [vmem:[%s172 + $0x2b0] sm:$0xff]
        %v262 = vld [vmem:[%s172 + $0x2b8] sm:$0xff]
        %v263 = vld [vmem:[%s172 + $0x2c0] sm:$0xff]
        %v264 = vld [vmem:[%s172 + $0x2c8] sm:$0xff]
        %v265 = vld [vmem:[%s172 + $0x2d0] sm:$0xff]
        %v266 = vld [vmem:[%s172 + $0x2d8] sm:$0xff]
        %v267 = vld [vmem:[%s172 + $0x2e0] sm:$0xff]
        %v268 = vld [vmem:[%s172 + $0x2e8] sm:$0xff]
        %v269 = vld [vmem:[%s172 + $0x2f0] sm:$0xff]
        %v270 = vld [vmem:[%s172 + $0x2f8] sm:$0xff]
        %v271 = vld [vmem:[%s1] sm:$0xff]
        %v272 = vld [vmem:[%s1 + $0x8] sm:$0xff]
        %v273 = vld [vmem:[%s1 + $0x10] sm:$0xff]
        %v274 = vld [vmem:[%s1 + $0x18] sm:$0xff]
        %v275 = vld [vmem:[%s1 + $0x20] sm:$0xff]
        %v276 = vld [vmem:[%s1 + $0x28] sm:$0xff]
        %v277 = vld [vmem:[%s1 + $0x30] sm:$0xff]
        %v278 = vld [vmem:[%s1 + $0x38] sm:$0xff]
        %v279 = vld [vmem:[%s1 + $0x40] sm:$0xff]
        %v280 = vld [vmem:[%s1 + $0x48] sm:$0xff]
        %v281 = vld [vmem:[%s1 + $0x50] sm:$0xff]
        %v282 = vld [vmem:[%s1 + $0x58] sm:$0xff]
        %v283 = vld [vmem:[%s1 + $0x60] sm:$0xff]
        %v284 = vld [vmem:[%s1 + $0x68] sm:$0xff]
        %v285 = vld [vmem:[%s1 + $0x70] sm:$0xff]
        %v286 = vld [vmem:[%s1 + $0x78] sm:$0xff]
        %v287 = vld [vmem:[%s1 + $0x80] sm:$0xff]
        %v288 = vld [vmem:[%s1 + $0x88] sm:$0xff]
        %v289 = vld [vmem:[%s1 + $0x90] sm:$0xff]
        %v290 = vld [vmem:[%s1 + $0x98] sm:$0xff]
        %v291 = vld [vmem:[%s1 + $0xa0] sm:$0xff]
        %v292 = vld [vmem:[%s1 + $0xa8] sm:$0xff]
        %v293 = vld [vmem:[%s1 + $0xb0] sm:$0xff]
        %v294 = vld [vmem:[%s1 + $0xb8] sm:$0xff]
        %v295 = vld [vmem:[%s1 + $0xc0] sm:$0xff]
        %v296 = vld [vmem:[%s1 + $0xc8] sm:$0xff]
        %v297 = vld [vmem:[%s1 + $0xd0] sm:$0xff]
        %v298 = vld [vmem:[%s1 + $0xd8] sm:$0xff]
        %v299 = vld [vmem:[%s1 + $0xe0] sm:$0xff]
        %v300 = vld [vmem:[%s1 + $0xe8] sm:$0xff]
        %v301 = vld [vmem:[%s1 + $0xf0] sm:$0xff]
        %v302 = vld [vmem:[%s1 + $0xf8] sm:$0xff]
        %v303 = vld [vmem:[%s1 + $0x100] sm:$0xff]
        %v304 = vld [vmem:[%s1 + $0x108] sm:$0xff]
        %v305 = vld [vmem:[%s1 + $0x110] sm:$0xff]
        %v306 = vld [vmem:[%s1 + $0x118] sm:$0xff]
        %v307 = vld [vmem:[%s1 + $0x120] sm:$0xff]
        %v308 = vld [vmem:[%s1 + $0x128] sm:$0xff]
        %v309 = vld [vmem:[%s1 + $0x130] sm:$0xff]
        %v310 = vld [vmem:[%s1 + $0x138] sm:$0xff]
        %v311 = vld [vmem:[%s1 + $0x140] sm:$0xff]
        %v312 = vld [vmem:[%s1 + $0x148] sm:$0xff]
        %v313 = vld [vmem:[%s1 + $0x150] sm:$0xff]
        %v314 = vld [vmem:[%s1 + $0x158] sm:$0xff]
        %v315 = vld [vmem:[%s1 + $0x160] sm:$0xff]
        %v316 = vld [vmem:[%s1 + $0x168] sm:$0xff]
        %v317 = vld [vmem:[%s1 + $0x170] sm:$0xff]
        %v318 = vld [vmem:[%s1 + $0x178] sm:$0xff]
        %v319 = vld [vmem:[%s1 + $0x180] sm:$0xff]
        %v320 = vld [vmem:[%s1 + $0x188] sm:$0xff]
        %v321 = vld [vmem:[%s1 + $0x190] sm:$0xff]
        %v322 = vld [vmem:[%s1 + $0x198] sm:$0xff]
        %v323 = vld [vmem:[%s1 + $0x1a0] sm:$0xff]
        %v324 = vld [vmem:[%s1 + $0x1a8] sm:$0xff]
        %v325 = vld [vmem:[%s1 + $0x1b0] sm:$0xff]
        %v326 = vld [vmem:[%s1 + $0x1b8] sm:$0xff]
        %v327 = vld [vmem:[%s1 + $0x1c0] sm:$0xff]
        %v328 = vld [vmem:[%s1 + $0x1c8] sm:$0xff]
        %v329 = vld [vmem:[%s1 + $0x1d0] sm:$0xff]
        %v330 = vld [vmem:[%s1 + $0x1d8] sm:$0xff]
        %v331 = vld [vmem:[%s1 + $0x1e0] sm:$0xff]
        %v332 = vld [vmem:[%s1 + $0x1e8] sm:$0xff]
        %v333 = vld [vmem:[%s1 + $0x1f0] sm:$0xff]
        %v334 = vld [vmem:[%s1 + $0x1f8] sm:$0xff]
        %v335 = vld [vmem:[%s1 + $0x200] sm:$0xff]
        %v336 = vld [vmem:[%s1 + $0x208] sm:$0xff]
        %v337 = vld [vmem:[%s1 + $0x210] sm:$0xff]
        %v338 = vld [vmem:[%s1 + $0x218] sm:$0xff]
        %v339 = vld [vmem:[%s1 + $0x220] sm:$0xff]
        %v340 = vld [vmem:[%s1 + $0x228] sm:$0xff]
        %v341 = vld [vmem:[%s1 + $0x230] sm:$0xff]
        %v342 = vld [vmem:[%s1 + $0x238] sm:$0xff]
        %v343 = vld [vmem:[%s1 + $0x240] sm:$0xff]
        %v344 = vld [vmem:[%s1 + $0x248] sm:$0xff]
        %v345 = vld [vmem:[%s1 + $0x250] sm:$0xff]
        %v346 = vld [vmem:[%s1 + $0x258] sm:$0xff]
        %v347 = vld [vmem:[%s1 + $0x260] sm:$0xff]
        %v348 = vld [vmem:[%s1 + $0x268] sm:$0xff]
        %v349 = vld [vmem:[%s1 + $0x270] sm:$0xff]
        %v350 = vld [vmem:[%s1 + $0x278] sm:$0xff]
        %v351 = vld [vmem:[%s1 + $0x280] sm:$0xff]
        %v352 = vld [vmem:[%s1 + $0x288] sm:$0xff]
        %v353 = vld [vmem:[%s1 + $0x290] sm:$0xff]
        %v354 = vld [vmem:[%s1 + $0x298] sm:$0xff]
        %v355 = vld [vmem:[%s1 + $0x2a0] sm:$0xff]
        %v356 = vld [vmem:[%s1 + $0x2a8] sm:$0xff]
        %v357 = vld [vmem:[%s1 + $0x2b0] sm:$0xff]
        %v358 = vld [vmem:[%s1 + $0x2b8] sm:$0xff]
        %v359 = vld [vmem:[%s1 + $0x2c0] sm:$0xff]
        %v360 = vld [vmem:[%s1 + $0x2c8] sm:$0xff]
        %v361 = vld [vmem:[%s1 + $0x2d0] sm:$0xff]
        %v362 = vld [vmem:[%s1 + $0x2d8] sm:$0xff]
        %v363 = vld [vmem:[%s1 + $0x2e0] sm:$0xff]
        %v364 = vld [vmem:[%s1 + $0x2e8] sm:$0xff]
        %v365 = vld [vmem:[%s1 + $0x2f0] sm:$0xff]
        %v366 = vld [vmem:[%s1 + $0x2f8] sm:$0xff]
        %v367 = vld [vmem:[%s2] sm:$0x3]
        %v369 = vlaneseq
        %v370 = vshrl.u32 %v369, 7
        %v371 = vsub.s32 0, %v370
        %v372 = vrot.slane %v367, %v371
        %v373 = vlaneseq
        %v374 = vshrl.u32 %v373, 7
        %v375 = vsub.s32 1, %v374
        %v376 = vrot.slane %v367, %v375
        %v475 = vunpack.c.l.b16 %v175
        %v476 = vunpack.c.h.b16 %v175
        %v477 = vunpack.c.l.b16 %v176
        %v478 = vunpack.c.h.b16 %v176
        %v479 = vunpack.c.l.b16 %v177
        %v480 = vunpack.c.h.b16 %v177
        %v481 = vunpack.c.l.b16 %v178
        %v482 = vunpack.c.h.b16 %v178
        %v483 = vunpack.c.l.b16 %v179
        %v484 = vunpack.c.h.b16 %v179
        %v485 = vunpack.c.l.b16 %v180
        %v486 = vunpack.c.h.b16 %v180
        %v487 = vunpack.c.l.b16 %v181
        %v488 = vunpack.c.h.b16 %v181
        %v489 = vunpack.c.l.b16 %v182
        %v490 = vunpack.c.h.b16 %v182
        %v491 = vunpack.c.l.b16 %v183
        %v492 = vunpack.c.h.b16 %v183
        %v493 = vunpack.c.l.b16 %v184
        %v494 = vunpack.c.h.b16 %v184
        %v495 = vunpack.c.l.b16 %v185
        %v496 = vunpack.c.h.b16 %v185
        %v497 = vunpack.c.l.b16 %v186
        %v498 = vunpack.c.h.b16 %v186
        %v499 = vunpack.c.l.b16 %v187
        %v500 = vunpack.c.h.b16 %v187
        %v501 = vunpack.c.l.b16 %v188
        %v502 = vunpack.c.h.b16 %v188
        %v503 = vunpack.c.l.b16 %v189
        %v504 = vunpack.c.h.b16 %v189
        %v505 = vunpack.c.l.b16 %v190
        %v506 = vunpack.c.h.b16 %v190
        %v507 = vunpack.c.l.b16 %v191
        %v508 = vunpack.c.h.b16 %v191
        %v509 = vunpack.c.l.b16 %v192
        %v510 = vunpack.c.h.b16 %v192
        %v511 = vunpack.c.l.b16 %v193
        %v512 = vunpack.c.h.b16 %v193
        %v513 = vunpack.c.l.b16 %v194
        %v514 = vunpack.c.h.b16 %v194
        %v515 = vunpack.c.l.b16 %v195
        %v516 = vunpack.c.h.b16 %v195
        %v517 = vunpack.c.l.b16 %v196
        %v518 = vunpack.c.h.b16 %v196
        %v519 = vunpack.c.l.b16 %v197
        %v520 = vunpack.c.h.b16 %v197
        %v521 = vunpack.c.l.b16 %v198
        %v522 = vunpack.c.h.b16 %v198
        %v523 = vunpack.c.l.b16 %v199
        %v524 = vunpack.c.h.b16 %v199
        %v525 = vunpack.c.l.b16 %v200
        %v526 = vunpack.c.h.b16 %v200
        %v527 = vunpack.c.l.b16 %v201
        %v528 = vunpack.c.h.b16 %v201
        %v529 = vunpack.c.l.b16 %v202
        %v530 = vunpack.c.h.b16 %v202
        %v531 = vunpack.c.l.b16 %v203
        %v532 = vunpack.c.h.b16 %v203
        %v533 = vunpack.c.l.b16 %v204
        %v534 = vunpack.c.h.b16 %v204
        %v535 = vunpack.c.l.b16 %v205
        %v536 = vunpack.c.h.b16 %v205
        %v537 = vunpack.c.l.b16 %v206
        %v538 = vunpack.c.h.b16 %v206
        %v539 = vunpack.c.l.b16 %v207
        %v540 = vunpack.c.h.b16 %v207
        %v541 = vunpack.c.l.b16 %v208
        %v542 = vunpack.c.h.b16 %v208
        %v543 = vunpack.c.l.b16 %v209
        %v544 = vunpack.c.h.b16 %v209
        %v545 = vunpack.c.l.b16 %v210
        %v546 = vunpack.c.h.b16 %v210
        %v547 = vunpack.c.l.b16 %v211
        %v548 = vunpack.c.h.b16 %v211
        %v549 = vunpack.c.l.b16 %v212
        %v550 = vunpack.c.h.b16 %v212
        %v551 = vunpack.c.l.b16 %v213
        %v552 = vunpack.c.h.b16 %v213
        %v553 = vunpack.c.l.b16 %v214
        %v554 = vunpack.c.h.b16 %v214
        %v555 = vunpack.c.l.b16 %v215
        %v556 = vunpack.c.h.b16 %v215
        %v557 = vunpack.c.l.b16 %v216
        %v558 = vunpack.c.h.b16 %v216
        %v559 = vunpack.c.l.b16 %v217
        %v560 = vunpack.c.h.b16 %v217
        %v561 = vunpack.c.l.b16 %v218
        %v562 = vunpack.c.h.b16 %v218
        %v563 = vunpack.c.l.b16 %v219
        %v564 = vunpack.c.h.b16 %v219
        %v565 = vunpack.c.l.b16 %v220
        %v566 = vunpack.c.h.b16 %v220
        %v567 = vunpack.c.l.b16 %v221
        %v568 = vunpack.c.h.b16 %v221
        %v569 = vunpack.c.l.b16 %v222
        %v570 = vunpack.c.h.b16 %v222
        %v571 = vunpack.c.l.b16 %v223
        %v572 = vunpack.c.h.b16 %v223
        %v573 = vunpack.c.l.b16 %v224
        %v574 = vunpack.c.h.b16 %v224
        %v575 = vunpack.c.l.b16 %v225
        %v576 = vunpack.c.h.b16 %v225
        %v577 = vunpack.c.l.b16 %v226
        %v578 = vunpack.c.h.b16 %v226
        %v579 = vunpack.c.l.b16 %v227
        %v580 = vunpack.c.h.b16 %v227
        %v581 = vunpack.c.l.b16 %v228
        %v582 = vunpack.c.h.b16 %v228
        %v583 = vunpack.c.l.b16 %v229
        %v584 = vunpack.c.h.b16 %v229
        %v585 = vunpack.c.l.b16 %v230
        %v586 = vunpack.c.h.b16 %v230
        %v587 = vunpack.c.l.b16 %v231
        %v588 = vunpack.c.h.b16 %v231
        %v589 = vunpack.c.l.b16 %v232
        %v590 = vunpack.c.h.b16 %v232
        %v591 = vunpack.c.l.b16 %v233
        %v592 = vunpack.c.h.b16 %v233
        %v593 = vunpack.c.l.b16 %v234
        %v594 = vunpack.c.h.b16 %v234
        %v595 = vunpack.c.l.b16 %v235
        %v596 = vunpack.c.h.b16 %v235
        %v597 = vunpack.c.l.b16 %v236
        %v598 = vunpack.c.h.b16 %v236
        %v599 = vunpack.c.l.b16 %v237
        %v600 = vunpack.c.h.b16 %v237
        %v601 = vunpack.c.l.b16 %v238
        %v602 = vunpack.c.h.b16 %v238
        %v603 = vunpack.c.l.b16 %v239
        %v604 = vunpack.c.h.b16 %v239
        %v605 = vunpack.c.l.b16 %v240
        %v606 = vunpack.c.h.b16 %v240
        %v607 = vunpack.c.l.b16 %v241
        %v608 = vunpack.c.h.b16 %v241
        %v609 = vunpack.c.l.b16 %v242
        %v610 = vunpack.c.h.b16 %v242
        %v611 = vunpack.c.l.b16 %v243
        %v612 = vunpack.c.h.b16 %v243
        %v613 = vunpack.c.l.b16 %v244
        %v614 = vunpack.c.h.b16 %v244
        %v615 = vunpack.c.l.b16 %v245
        %v616 = vunpack.c.h.b16 %v245
        %v617 = vunpack.c.l.b16 %v246
        %v618 = vunpack.c.h.b16 %v246
        %v619 = vunpack.c.l.b16 %v247
        %v620 = vunpack.c.h.b16 %v247
        %v621 = vunpack.c.l.b16 %v248
        %v622 = vunpack.c.h.b16 %v248
        %v623 = vunpack.c.l.b16 %v249
        %v624 = vunpack.c.h.b16 %v249
        %v625 = vunpack.c.l.b16 %v250
        %v626 = vunpack.c.h.b16 %v250
        %v627 = vunpack.c.l.b16 %v251
        %v628 = vunpack.c.h.b16 %v251
        %v629 = vunpack.c.l.b16 %v252
        %v630 = vunpack.c.h.b16 %v252
        %v631 = vunpack.c.l.b16 %v253
        %v632 = vunpack.c.h.b16 %v253
        %v633 = vunpack.c.l.b16 %v254
        %v634 = vunpack.c.h.b16 %v254
        %v635 = vunpack.c.l.b16 %v255
        %v636 = vunpack.c.h.b16 %v255
        %v637 = vunpack.c.l.b16 %v256
        %v638 = vunpack.c.h.b16 %v256
        %v639 = vunpack.c.l.b16 %v257
        %v640 = vunpack.c.h.b16 %v257
        %v641 = vunpack.c.l.b16 %v258
        %v642 = vunpack.c.h.b16 %v258
        %v643 = vunpack.c.l.b16 %v259
        %v644 = vunpack.c.h.b16 %v259
        %v645 = vunpack.c.l.b16 %v260
        %v646 = vunpack.c.h.b16 %v260
        %v647 = vunpack.c.l.b16 %v261
        %v648 = vunpack.c.h.b16 %v261
        %v649 = vunpack.c.l.b16 %v262
        %v650 = vunpack.c.h.b16 %v262
        %v651 = vunpack.c.l.b16 %v263
        %v652 = vunpack.c.h.b16 %v263
        %v653 = vunpack.c.l.b16 %v264
        %v654 = vunpack.c.h.b16 %v264
        %v655 = vunpack.c.l.b16 %v265
        %v656 = vunpack.c.h.b16 %v265
        %v657 = vunpack.c.l.b16 %v266
        %v658 = vunpack.c.h.b16 %v266
        %v659 = vunpack.c.l.b16 %v267
        %v660 = vunpack.c.h.b16 %v267
        %v661 = vunpack.c.l.b16 %v268
        %v662 = vunpack.c.h.b16 %v268
        %v663 = vunpack.c.l.b16 %v269
        %v664 = vunpack.c.h.b16 %v269
        %v665 = vunpack.c.l.b16 %v270
        %v666 = vunpack.c.h.b16 %v270
        %v667 = vpack.c.b16 %v481, %v475
        %v668 = vpack.c.b16 %v482, %v476
        %v669 = vpack.c.b16 %v483, %v477
        %v670 = vpack.c.b16 %v484, %v478
        %v671 = vpack.c.b16 %v485, %v479
        %v672 = vpack.c.b16 %v486, %v480
        %v673 = vpack.c.b16 %v493, %v487
        %v674 = vpack.c.b16 %v494, %v488
        %v675 = vpack.c.b16 %v495, %v489
        %v676 = vpack.c.b16 %v496, %v490
        %v677 = vpack.c.b16 %v497, %v491
        %v678 = vpack.c.b16 %v498, %v492
        %v679 = vpack.c.b16 %v505, %v499
        %v680 = vpack.c.b16 %v506, %v500
        %v681 = vpack.c.b16 %v507, %v501
        %v682 = vpack.c.b16 %v508, %v502
        %v683 = vpack.c.b16 %v509, %v503
        %v684 = vpack.c.b16 %v510, %v504
        %v685 = vpack.c.b16 %v517, %v511
        %v686 = vpack.c.b16 %v518, %v512
        %v687 = vpack.c.b16 %v519, %v513
        %v688 = vpack.c.b16 %v520, %v514
        %v689 = vpack.c.b16 %v521, %v515
        %v690 = vpack.c.b16 %v522, %v516
        %v691 = vpack.c.b16 %v529, %v523
        %v692 = vpack.c.b16 %v530, %v524
        %v693 = vpack.c.b16 %v531, %v525
        %v694 = vpack.c.b16 %v532, %v526
        %v695 = vpack.c.b16 %v533, %v527
        %v696 = vpack.c.b16 %v534, %v528
        %v697 = vpack.c.b16 %v541, %v535
        %v698 = vpack.c.b16 %v542, %v536
        %v699 = vpack.c.b16 %v543, %v537
        %v700 = vpack.c.b16 %v544, %v538
        %v701 = vpack.c.b16 %v545, %v539
        %v702 = vpack.c.b16 %v546, %v540
        %v703 = vpack.c.b16 %v553, %v547
        %v704 = vpack.c.b16 %v554, %v548
        %v705 = vpack.c.b16 %v555, %v549
        %v706 = vpack.c.b16 %v556, %v550
        %v707 = vpack.c.b16 %v557, %v551
        %v708 = vpack.c.b16 %v558, %v552
        %v709 = vpack.c.b16 %v565, %v559
        %v710 = vpack.c.b16 %v566, %v560
        %v711 = vpack.c.b16 %v567, %v561
        %v712 = vpack.c.b16 %v568, %v562
        %v713 = vpack.c.b16 %v569, %v563
        %v714 = vpack.c.b16 %v570, %v564
        %v715 = vpack.c.b16 %v577, %v571
        %v716 = vpack.c.b16 %v578, %v572
        %v717 = vpack.c.b16 %v579, %v573
        %v718 = vpack.c.b16 %v580, %v574
        %v719 = vpack.c.b16 %v581, %v575
        %v720 = vpack.c.b16 %v582, %v576
        %v721 = vpack.c.b16 %v589, %v583
        %v722 = vpack.c.b16 %v590, %v584
        %v723 = vpack.c.b16 %v591, %v585
        %v724 = vpack.c.b16 %v592, %v586
        %v725 = vpack.c.b16 %v593, %v587
        %v726 = vpack.c.b16 %v594, %v588
        %v727 = vpack.c.b16 %v601, %v595
        %v728 = vpack.c.b16 %v602, %v596
        %v729 = vpack.c.b16 %v603, %v597
        %v730 = vpack.c.b16 %v604, %v598
        %v731 = vpack.c.b16 %v605, %v599
        %v732 = vpack.c.b16 %v606, %v600
        %v733 = vpack.c.b16 %v613, %v607
        %v734 = vpack.c.b16 %v614, %v608
        %v735 = vpack.c.b16 %v615, %v609
        %v736 = vpack.c.b16 %v616, %v610
        %v737 = vpack.c.b16 %v617, %v611
        %v738 = vpack.c.b16 %v618, %v612
        %v739 = vpack.c.b16 %v625, %v619
        %v740 = vpack.c.b16 %v626, %v620
        %v741 = vpack.c.b16 %v627, %v621
        %v742 = vpack.c.b16 %v628, %v622
        %v743 = vpack.c.b16 %v629, %v623
        %v744 = vpack.c.b16 %v630, %v624
        %v745 = vpack.c.b16 %v637, %v631
        %v746 = vpack.c.b16 %v638, %v632
        %v747 = vpack.c.b16 %v639, %v633
        %v748 = vpack.c.b16 %v640, %v634
        %v749 = vpack.c.b16 %v641, %v635
        %v750 = vpack.c.b16 %v642, %v636
        %v751 = vpack.c.b16 %v649, %v643
        %v752 = vpack.c.b16 %v650, %v644
        %v753 = vpack.c.b16 %v651, %v645
        %v754 = vpack.c.b16 %v652, %v646
        %v755 = vpack.c.b16 %v653, %v647
        %v756 = vpack.c.b16 %v654, %v648
        %v757 = vpack.c.b16 %v661, %v655
        %v758 = vpack.c.b16 %v662, %v656
        %v759 = vpack.c.b16 %v663, %v657
        %v760 = vpack.c.b16 %v664, %v658
        %v761 = vpack.c.b16 %v665, %v659
        %v762 = vpack.c.b16 %v666, %v660
        %v955 = vunpack.c.l.b16 %v271
        %v956 = vunpack.c.h.b16 %v271
        %v957 = vunpack.c.l.b16 %v272
        %v958 = vunpack.c.h.b16 %v272
        %v959 = vunpack.c.l.b16 %v273
        %v960 = vunpack.c.h.b16 %v273
        %v961 = vunpack.c.l.b16 %v274
        %v962 = vunpack.c.h.b16 %v274
        %v963 = vunpack.c.l.b16 %v275
        %v964 = vunpack.c.h.b16 %v275
        %v965 = vunpack.c.l.b16 %v276
        %v966 = vunpack.c.h.b16 %v276
        %v967 = vunpack.c.l.b16 %v277
        %v968 = vunpack.c.h.b16 %v277
        %v969 = vunpack.c.l.b16 %v278
        %v970 = vunpack.c.h.b16 %v278
        %v971 = vunpack.c.l.b16 %v279
        %v972 = vunpack.c.h.b16 %v279
        %v973 = vunpack.c.l.b16 %v280
        %v974 = vunpack.c.h.b16 %v280
        %v975 = vunpack.c.l.b16 %v281
        %v976 = vunpack.c.h.b16 %v281
        %v977 = vunpack.c.l.b16 %v282
        %v978 = vunpack.c.h.b16 %v282
        %v979 = vunpack.c.l.b16 %v283
        %v980 = vunpack.c.h.b16 %v283
        %v981 = vunpack.c.l.b16 %v284
        %v982 = vunpack.c.h.b16 %v284
        %v983 = vunpack.c.l.b16 %v285
        %v984 = vunpack.c.h.b16 %v285
        %v985 = vunpack.c.l.b16 %v286
        %v986 = vunpack.c.h.b16 %v286
        %v987 = vunpack.c.l.b16 %v287
        %v988 = vunpack.c.h.b16 %v287
        %v989 = vunpack.c.l.b16 %v288
        %v990 = vunpack.c.h.b16 %v288
        %v991 = vunpack.c.l.b16 %v289
        %v992 = vunpack.c.h.b16 %v289
        %v993 = vunpack.c.l.b16 %v290
        %v994 = vunpack.c.h.b16 %v290
        %v995 = vunpack.c.l.b16 %v291
        %v996 = vunpack.c.h.b16 %v291
        %v997 = vunpack.c.l.b16 %v292
        %v998 = vunpack.c.h.b16 %v292
        %v999 = vunpack.c.l.b16 %v293
        %v1000 = vunpack.c.h.b16 %v293
        %v1001 = vunpack.c.l.b16 %v294
        %v1002 = vunpack.c.h.b16 %v294
        %v1003 = vunpack.c.l.b16 %v295
        %v1004 = vunpack.c.h.b16 %v295
        %v1005 = vunpack.c.l.b16 %v296
        %v1006 = vunpack.c.h.b16 %v296
        %v1007 = vunpack.c.l.b16 %v297
        %v1008 = vunpack.c.h.b16 %v297
        %v1009 = vunpack.c.l.b16 %v298
        %v1010 = vunpack.c.h.b16 %v298
        %v1011 = vunpack.c.l.b16 %v299
        %v1012 = vunpack.c.h.b16 %v299
        %v1013 = vunpack.c.l.b16 %v300
        %v1014 = vunpack.c.h.b16 %v300
        %v1015 = vunpack.c.l.b16 %v301
        %v1016 = vunpack.c.h.b16 %v301
        %v1017 = vunpack.c.l.b16 %v302
        %v1018 = vunpack.c.h.b16 %v302
        %v1019 = vunpack.c.l.b16 %v303
        %v1020 = vunpack.c.h.b16 %v303
        %v1021 = vunpack.c.l.b16 %v304
        %v1022 = vunpack.c.h.b16 %v304
        %v1023 = vunpack.c.l.b16 %v305
        %v1024 = vunpack.c.h.b16 %v305
        %v1025 = vunpack.c.l.b16 %v306
        %v1026 = vunpack.c.h.b16 %v306
        %v1027 = vunpack.c.l.b16 %v307
        %v1028 = vunpack.c.h.b16 %v307
        %v1029 = vunpack.c.l.b16 %v308
        %v1030 = vunpack.c.h.b16 %v308
        %v1031 = vunpack.c.l.b16 %v309
        %v1032 = vunpack.c.h.b16 %v309
        %v1033 = vunpack.c.l.b16 %v310
        %v1034 = vunpack.c.h.b16 %v310
        %v1035 = vunpack.c.l.b16 %v311
        %v1036 = vunpack.c.h.b16 %v311
        %v1037 = vunpack.c.l.b16 %v312
        %v1038 = vunpack.c.h.b16 %v312
        %v1039 = vunpack.c.l.b16 %v313
        %v1040 = vunpack.c.h.b16 %v313
        %v1041 = vunpack.c.l.b16 %v314
        %v1042 = vunpack.c.h.b16 %v314
        %v1043 = vunpack.c.l.b16 %v315
        %v1044 = vunpack.c.h.b16 %v315
        %v1045 = vunpack.c.l.b16 %v316
        %v1046 = vunpack.c.h.b16 %v316
        %v1047 = vunpack.c.l.b16 %v317
        %v1048 = vunpack.c.h.b16 %v317
        %v1049 = vunpack.c.l.b16 %v318
        %v1050 = vunpack.c.h.b16 %v318
        %v1051 = vunpack.c.l.b16 %v319
        %v1052 = vunpack.c.h.b16 %v319
        %v1053 = vunpack.c.l.b16 %v320
        %v1054 = vunpack.c.h.b16 %v320
        %v1055 = vunpack.c.l.b16 %v321
        %v1056 = vunpack.c.h.b16 %v321
        %v1057 = vunpack.c.l.b16 %v322
        %v1058 = vunpack.c.h.b16 %v322
        %v1059 = vunpack.c.l.b16 %v323
        %v1060 = vunpack.c.h.b16 %v323
        %v1061 = vunpack.c.l.b16 %v324
        %v1062 = vunpack.c.h.b16 %v324
        %v1063 = vunpack.c.l.b16 %v325
        %v1064 = vunpack.c.h.b16 %v325
        %v1065 = vunpack.c.l.b16 %v326
        %v1066 = vunpack.c.h.b16 %v326
        %v1067 = vunpack.c.l.b16 %v327
        %v1068 = vunpack.c.h.b16 %v327
        %v1069 = vunpack.c.l.b16 %v328
        %v1070 = vunpack.c.h.b16 %v328
        %v1071 = vunpack.c.l.b16 %v329
        %v1072 = vunpack.c.h.b16 %v329
        %v1073 = vunpack.c.l.b16 %v330
        %v1074 = vunpack.c.h.b16 %v330
        %v1075 = vunpack.c.l.b16 %v331
        %v1076 = vunpack.c.h.b16 %v331
        %v1077 = vunpack.c.l.b16 %v332
        %v1078 = vunpack.c.h.b16 %v332
        %v1079 = vunpack.c.l.b16 %v333
        %v1080 = vunpack.c.h.b16 %v333
        %v1081 = vunpack.c.l.b16 %v334
        %v1082 = vunpack.c.h.b16 %v334
        %v1083 = vunpack.c.l.b16 %v335
        %v1084 = vunpack.c.h.b16 %v335
        %v1085 = vunpack.c.l.b16 %v336
        %v1086 = vunpack.c.h.b16 %v336
        %v1087 = vunpack.c.l.b16 %v337
        %v1088 = vunpack.c.h.b16 %v337
        %v1089 = vunpack.c.l.b16 %v338
        %v1090 = vunpack.c.h.b16 %v338
        %v1091 = vunpack.c.l.b16 %v339
        %v1092 = vunpack.c.h.b16 %v339
        %v1093 = vunpack.c.l.b16 %v340
        %v1094 = vunpack.c.h.b16 %v340
        %v1095 = vunpack.c.l.b16 %v341
        %v1096 = vunpack.c.h.b16 %v341
        %v1097 = vunpack.c.l.b16 %v342
        %v1098 = vunpack.c.h.b16 %v342
        %v1099 = vunpack.c.l.b16 %v343
        %v1100 = vunpack.c.h.b16 %v343
        %v1101 = vunpack.c.l.b16 %v344
        %v1102 = vunpack.c.h.b16 %v344
        %v1103 = vunpack.c.l.b16 %v345
        %v1104 = vunpack.c.h.b16 %v345
        %v1105 = vunpack.c.l.b16 %v346
        %v1106 = vunpack.c.h.b16 %v346
        %v1107 = vunpack.c.l.b16 %v347
        %v1108 = vunpack.c.h.b16 %v347
        %v1109 = vunpack.c.l.b16 %v348
        %v1110 = vunpack.c.h.b16 %v348
        %v1111 = vunpack.c.l.b16 %v349
        %v1112 = vunpack.c.h.b16 %v349
        %v1113 = vunpack.c.l.b16 %v350
        %v1114 = vunpack.c.h.b16 %v350
        %v1115 = vunpack.c.l.b16 %v351
        %v1116 = vunpack.c.h.b16 %v351
        %v1117 = vunpack.c.l.b16 %v352
        %v1118 = vunpack.c.h.b16 %v352
        %v1119 = vunpack.c.l.b16 %v353
        %v1120 = vunpack.c.h.b16 %v353
        %v1121 = vunpack.c.l.b16 %v354
        %v1122 = vunpack.c.h.b16 %v354
        %v1123 = vunpack.c.l.b16 %v355
        %v1124 = vunpack.c.h.b16 %v355
        %v1125 = vunpack.c.l.b16 %v356
        %v1126 = vunpack.c.h.b16 %v356
        %v1127 = vunpack.c.l.b16 %v357
        %v1128 = vunpack.c.h.b16 %v357
        %v1129 = vunpack.c.l.b16 %v358
        %v1130 = vunpack.c.h.b16 %v358
        %v1131 = vunpack.c.l.b16 %v359
        %v1132 = vunpack.c.h.b16 %v359
        %v1133 = vunpack.c.l.b16 %v360
        %v1134 = vunpack.c.h.b16 %v360
        %v1135 = vunpack.c.l.b16 %v361
        %v1136 = vunpack.c.h.b16 %v361
        %v1137 = vunpack.c.l.b16 %v362
        %v1138 = vunpack.c.h.b16 %v362
        %v1139 = vunpack.c.l.b16 %v363
        %v1140 = vunpack.c.h.b16 %v363
        %v1141 = vunpack.c.l.b16 %v364
        %v1142 = vunpack.c.h.b16 %v364
        %v1143 = vunpack.c.l.b16 %v365
        %v1144 = vunpack.c.h.b16 %v365
        %v1145 = vunpack.c.l.b16 %v366
        %v1146 = vunpack.c.h.b16 %v366
        %v1147 = vpack.c.b16 %v957, %v955
        %v1148 = vpack.c.b16 %v958, %v956
        %v1149 = vpack.c.b16 %v961, %v959
        %v1150 = vpack.c.b16 %v962, %v960
        %v1151 = vpack.c.b16 %v965, %v963
        %v1152 = vpack.c.b16 %v966, %v964
        %v1153 = vpack.c.b16 %v969, %v967
        %v1154 = vpack.c.b16 %v970, %v968
        %v1155 = vpack.c.b16 %v973, %v971
        %v1156 = vpack.c.b16 %v974, %v972
        %v1157 = vpack.c.b16 %v977, %v975
        %v1158 = vpack.c.b16 %v978, %v976
        %v1159 = vpack.c.b16 %v981, %v979
        %v1160 = vpack.c.b16 %v982, %v980
        %v1161 = vpack.c.b16 %v985, %v983
        %v1162 = vpack.c.b16 %v986, %v984
        %v1163 = vpack.c.b16 %v989, %v987
        %v1164 = vpack.c.b16 %v990, %v988
        %v1165 = vpack.c.b16 %v993, %v991
        %v1166 = vpack.c.b16 %v994, %v992
        %v1167 = vpack.c.b16 %v997, %v995
        %v1168 = vpack.c.b16 %v998, %v996
        %v1169 = vpack.c.b16 %v1001, %v999
        %v1170 = vpack.c.b16 %v1002, %v1000
        %v1171 = vpack.c.b16 %v1005, %v1003
        %v1172 = vpack.c.b16 %v1006, %v1004
        %v1173 = vpack.c.b16 %v1009, %v1007
        %v1174 = vpack.c.b16 %v1010, %v1008
        %v1175 = vpack.c.b16 %v1013, %v1011
        %v1176 = vpack.c.b16 %v1014, %v1012
        %v1177 = vpack.c.b16 %v1017, %v1015
        %v1178 = vpack.c.b16 %v1018, %v1016
        %v1179 = vpack.c.b16 %v1021, %v1019
        %v1180 = vpack.c.b16 %v1022, %v1020
        %v1181 = vpack.c.b16 %v1025, %v1023
        %v1182 = vpack.c.b16 %v1026, %v1024
        %v1183 = vpack.c.b16 %v1029, %v1027
        %v1184 = vpack.c.b16 %v1030, %v1028
        %v1185 = vpack.c.b16 %v1033, %v1031
        %v1186 = vpack.c.b16 %v1034, %v1032
        %v1187 = vpack.c.b16 %v1037, %v1035
        %v1188 = vpack.c.b16 %v1038, %v1036
        %v1189 = vpack.c.b16 %v1041, %v1039
        %v1190 = vpack.c.b16 %v1042, %v1040
        %v1191 = vpack.c.b16 %v1045, %v1043
        %v1192 = vpack.c.b16 %v1046, %v1044
        %v1193 = vpack.c.b16 %v1049, %v1047
        %v1194 = vpack.c.b16 %v1050, %v1048
        %v1195 = vpack.c.b16 %v1053, %v1051
        %v1196 = vpack.c.b16 %v1054, %v1052
        %v1197 = vpack.c.b16 %v1057, %v1055
        %v1198 = vpack.c.b16 %v1058, %v1056
        %v1199 = vpack.c.b16 %v1061, %v1059
        %v1200 = vpack.c.b16 %v1062, %v1060
        %v1201 = vpack.c.b16 %v1065, %v1063
        %v1202 = vpack.c.b16 %v1066, %v1064
        %v1203 = vpack.c.b16 %v1069, %v1067
        %v1204 = vpack.c.b16 %v1070, %v1068
        %v1205 = vpack.c.b16 %v1073, %v1071
        %v1206 = vpack.c.b16 %v1074, %v1072
        %v1207 = vpack.c.b16 %v1077, %v1075
        %v1208 = vpack.c.b16 %v1078, %v1076
        %v1209 = vpack.c.b16 %v1081, %v1079
        %v1210 = vpack.c.b16 %v1082, %v1080
        %v1211 = vpack.c.b16 %v1085, %v1083
        %v1212 = vpack.c.b16 %v1086, %v1084
        %v1213 = vpack.c.b16 %v1089, %v1087
        %v1214 = vpack.c.b16 %v1090, %v1088
        %v1215 = vpack.c.b16 %v1093, %v1091
        %v1216 = vpack.c.b16 %v1094, %v1092
        %v1217 = vpack.c.b16 %v1097, %v1095
        %v1218 = vpack.c.b16 %v1098, %v1096
        %v1219 = vpack.c.b16 %v1101, %v1099
        %v1220 = vpack.c.b16 %v1102, %v1100
        %v1221 = vpack.c.b16 %v1105, %v1103
        %v1222 = vpack.c.b16 %v1106, %v1104
        %v1223 = vpack.c.b16 %v1109, %v1107
        %v1224 = vpack.c.b16 %v1110, %v1108
        %v1225 = vpack.c.b16 %v1113, %v1111
        %v1226 = vpack.c.b16 %v1114, %v1112
        %v1227 = vpack.c.b16 %v1117, %v1115
        %v1228 = vpack.c.b16 %v1118, %v1116
        %v1229 = vpack.c.b16 %v1121, %v1119
        %v1230 = vpack.c.b16 %v1122, %v1120
        %v1231 = vpack.c.b16 %v1125, %v1123
        %v1232 = vpack.c.b16 %v1126, %v1124
        %v1233 = vpack.c.b16 %v1129, %v1127
        %v1234 = vpack.c.b16 %v1130, %v1128
        %v1235 = vpack.c.b16 %v1133, %v1131
        %v1236 = vpack.c.b16 %v1134, %v1132
        %v1237 = vpack.c.b16 %v1137, %v1135
        %v1238 = vpack.c.b16 %v1138, %v1136
        %v1239 = vpack.c.b16 %v1141, %v1139
        %v1240 = vpack.c.b16 %v1142, %v1140
        %v1241 = vpack.c.b16 %v1145, %v1143
        %v1242 = vpack.c.b16 %v1146, %v1144
        %1339 = vmatprep.subr.bf16.mxu0 %v1148
        %1340 = vmatpush1.bf16.msra.mxu0 %v1147
        %1341 = vmatprep.subr.bf16.mxu0 %v1150
        %1342 = vmatpush1.bf16.msra.mxu0 %v1149
        %1343 = vmatprep.subr.bf16.mxu0 %v1152
        %1344 = vmatpush1.bf16.msra.mxu0 %v1151
        %1345 = vmatprep.subr.bf16.mxu0 %v1154
        %1346 = vmatpush1.bf16.msra.mxu0 %v1153
        %1347 = vmatprep.subr.bf16.mxu0 %v1156
        %1348 = vmatpush1.bf16.msra.mxu0 %v1155
        %1349 = vmatprep.subr.bf16.mxu0 %v1158
        %1350 = vmatpush1.bf16.msra.mxu0 %v1157
        %1351 = vmatprep.subr.bf16.mxu0 %v1160
        %1352 = vmatpush1.bf16.msra.mxu0 %v1159
        %1353 = vmatprep.subr.bf16.mxu0 %v1162
        %1354 = vmatpush1.bf16.msra.mxu0 %v1161
        %1355 = vmatprep.subr.bf16.mxu0 %v1164
        %1356 = vmatpush1.bf16.msra.mxu0 %v1163
        %1357 = vmatprep.subr.bf16.mxu0 %v1166
        %1358 = vmatpush1.bf16.msra.mxu0 %v1165
        %1359 = vmatprep.subr.bf16.mxu0 %v1168
        %1360 = vmatpush1.bf16.msra.mxu0 %v1167
        %1361 = vmatprep.subr.bf16.mxu0 %v1170
        %1362 = vmatpush1.bf16.msra.mxu0 %v1169
        %1363 = vmatprep.subr.bf16.mxu0 %v1172
        %1364 = vmatpush1.bf16.msra.mxu0 %v1171
        %1365 = vmatprep.subr.bf16.mxu0 %v1174
        %1366 = vmatpush1.bf16.msra.mxu0 %v1173
        %1367 = vmatprep.subr.bf16.mxu0 %v1176
        %1368 = vmatpush1.bf16.msra.mxu0 %v1175
        %1369 = vmatprep.subr.bf16.mxu0 %v1178
        %1370 = vmatpush1.bf16.msra.mxu0 %v1177
        %1371 = vmatprep.mubr.bf16.mxu0 %v668
        %1372 = vmatmul.mubr.bf16.gmra.mrb[0].mxu0 %v667
        %v1373 = vpop.f32.mrb[0].mxu0
        %v1374 = vadd.f32 %v372, %v1373
        %v1375 = vpop.f32.mrb[0].mxu0
        %v1376 = vadd.f32 %v376, %v1375
        %v1377 = vpop.f32.mrb[0].mxu0
        %v1378 = vadd.f32 %v372, %v1377
        %v1379 = vpop.f32.mrb[0].mxu0
        %v1380 = vadd.f32 %v376, %v1379
        %1381 = vmatprep.mubr.bf16.mxu0 %v674
        %1382 = vmatmul.mubr.bf16.gmra.mrb[0].mxu0 %v673
        %v1383 = vpop.f32.mrb[0].mxu0
        %v1384 = vadd.f32 %v372, %v1383
        %v1385 = vpop.f32.mrb[0].mxu0
        %v1386 = vadd.f32 %v376, %v1385
        %v1387 = vpop.f32.mrb[0].mxu0
        %v1388 = vadd.f32 %v372, %v1387
        %v1389 = vpop.f32.mrb[0].mxu0
        %v1390 = vadd.f32 %v376, %v1389
        %1391 = vmatprep.mubr.bf16.mxu0 %v680
        %1392 = vmatmul.mubr.bf16.gmra.mrb[0].mxu0 %v679
        %v1393 = vpop.f32.mrb[0].mxu0
        %v1394 = vadd.f32 %v372, %v1393
        %v1395 = vpop.f32.mrb[0].mxu0
        %v1396 = vadd.f32 %v376, %v1395
        %v1397 = vpop.f32.mrb[0].mxu0
        %v1398 = vadd.f32 %v372, %v1397
        %v1399 = vpop.f32.mrb[0].mxu0
        %v1400 = vadd.f32 %v376, %v1399
        %1401 = vmatprep.mubr.bf16.mxu0 %v686
        %1402 = vmatmul.mubr.bf16.gmra.mrb[0].mxu0 %v685
        %v1403 = vpop.f32.mrb[0].mxu0
        %v1404 = vadd.f32 %v372, %v1403
        %v1405 = vpop.f32.mrb[0].mxu0
        %v1406 = vadd.f32 %v376, %v1405
        %v1407 = vpop.f32.mrb[0].mxu0
        %v1408 = vadd.f32 %v372, %v1407
        %v1409 = vpop.f32.mrb[0].mxu0
        %v1410 = vadd.f32 %v376, %v1409
        %1411 = vmatprep.mubr.bf16.mxu0 %v692
        %1412 = vmatmul.mubr.bf16.gmra.mrb[0].mxu0 %v691
        %v1413 = vpop.f32.mrb[0].mxu0
        %v1414 = vadd.f32 %v372, %v1413
        %v1415 = vpop.f32.mrb[0].mxu0
        %v1416 = vadd.f32 %v376, %v1415
        %v1417 = vpop.f32.mrb[0].mxu0
        %v1418 = vadd.f32 %v372, %v1417
        %v1419 = vpop.f32.mrb[0].mxu0
        %v1420 = vadd.f32 %v376, %v1419
        %1421 = vmatprep.mubr.bf16.mxu0 %v698
        %1422 = vmatmul.mubr.bf16.gmra.mrb[0].mxu0 %v697
        %v1423 = vpop.f32.mrb[0].mxu0
        %v1424 = vadd.f32 %v372, %v1423
        %v1425 = vpop.f32.mrb[0].mxu0
        %v1426 = vadd.f32 %v376, %v1425
        %v1427 = vpop.f32.mrb[0].mxu0
        %v1428 = vadd.f32 %v372, %v1427
        %v1429 = vpop.f32.mrb[0].mxu0
        %v1430 = vadd.f32 %v376, %v1429
        %1431 = vmatprep.mubr.bf16.mxu0 %v704
        %1432 = vmatmul.mubr.bf16.gmra.mrb[0].mxu0 %v703
        %v1433 = vpop.f32.mrb[0].mxu0
        %v1434 = vadd.f32 %v372, %v1433
        %v1435 = vpop.f32.mrb[0].mxu0
        %v1436 = vadd.f32 %v376, %v1435
        %v1437 = vpop.f32.mrb[0].mxu0
        %v1438 = vadd.f32 %v372, %v1437
        %v1439 = vpop.f32.mrb[0].mxu0
        %v1440 = vadd.f32 %v376, %v1439
        %1441 = vmatprep.mubr.bf16.mxu0 %v710
        %1442 = vmatmul.mubr.bf16.gmra.mrb[0].mxu0 %v709
        %v1443 = vpop.f32.mrb[0].mxu0
        %v1444 = vadd.f32 %v372, %v1443
        %v1445 = vpop.f32.mrb[0].mxu0
        %v1446 = vadd.f32 %v376, %v1445
        %v1447 = vpop.f32.mrb[0].mxu0
        %v1448 = vadd.f32 %v372, %v1447
        %v1449 = vpop.f32.mrb[0].mxu0
        %v1450 = vadd.f32 %v376, %v1449
        %1451 = vmatprep.mubr.bf16.mxu0 %v716
        %1452 = vmatmul.mubr.bf16.gmra.mrb[0].mxu0 %v715
        %v1453 = vpop.f32.mrb[0].mxu0
        %v1454 = vadd.f32 %v372, %v1453
        %v1455 = vpop.f32.mrb[0].mxu0
        %v1456 = vadd.f32 %v376, %v1455
        %v1457 = vpop.f32.mrb[0].mxu0
        %v1458 = vadd.f32 %v372, %v1457
        %v1459 = vpop.f32.mrb[0].mxu0
        %v1460 = vadd.f32 %v376, %v1459
        %1461 = vmatprep.mubr.bf16.mxu0 %v722
        %1462 = vmatmul.mubr.bf16.gmra.mrb[0].mxu0 %v721
        %v1463 = vpop.f32.mrb[0].mxu0
        %v1464 = vadd.f32 %v372, %v1463
        %v1465 = vpop.f32.mrb[0].mxu0
        %v1466 = vadd.f32 %v376, %v1465
        %v1467 = vpop.f32.mrb[0].mxu0
        %v1468 = vadd.f32 %v372, %v1467
        %v1469 = vpop.f32.mrb[0].mxu0
        %v1470 = vadd.f32 %v376, %v1469
        %1471 = vmatprep.mubr.bf16.mxu0 %v728
        %1472 = vmatmul.mubr.bf16.gmra.mrb[0].mxu0 %v727
        %v1473 = vpop.f32.mrb[0].mxu0
        %v1474 = vadd.f32 %v372, %v1473
        %v1475 = vpop.f32.mrb[0].mxu0
        %v1476 = vadd.f32 %v376, %v1475
        %v1477 = vpop.f32.mrb[0].mxu0
        %v1478 = vadd.f32 %v372, %v1477
        %v1479 = vpop.f32.mrb[0].mxu0
        %v1480 = vadd.f32 %v376, %v1479
        %1481 = vmatprep.mubr.bf16.mxu0 %v734
        %1482 = vmatmul.mubr.bf16.gmra.mrb[0].mxu0 %v733
        %v1483 = vpop.f32.mrb[0].mxu0
        %v1484 = vadd.f32 %v372, %v1483
        %v1485 = vpop.f32.mrb[0].mxu0
        %v1486 = vadd.f32 %v376, %v1485
        %v1487 = vpop.f32.mrb[0].mxu0
        %v1488 = vadd.f32 %v372, %v1487
        %v1489 = vpop.f32.mrb[0].mxu0
        %v1490 = vadd.f32 %v376, %v1489
        %1491 = vmatprep.mubr.bf16.mxu0 %v740
        %1492 = vmatmul.mubr.bf16.gmra.mrb[0].mxu0 %v739
        %v1493 = vpop.f32.mrb[0].mxu0
        %v1494 = vadd.f32 %v372, %v1493
        %v1495 = vpop.f32.mrb[0].mxu0
        %v1496 = vadd.f32 %v376, %v1495
        %v1497 = vpop.f32.mrb[0].mxu0
        %v1498 = vadd.f32 %v372, %v1497
        %v1499 = vpop.f32.mrb[0].mxu0
        %v1500 = vadd.f32 %v376, %v1499
        %1501 = vmatprep.mubr.bf16.mxu0 %v746
        %1502 = vmatmul.mubr.bf16.gmra.mrb[0].mxu0 %v745
        %v1503 = vpop.f32.mrb[0].mxu0
        %v1504 = vadd.f32 %v372, %v1503
        %v1505 = vpop.f32.mrb[0].mxu0
        %v1506 = vadd.f32 %v376, %v1505
        %v1507 = vpop.f32.mrb[0].mxu0
        %v1508 = vadd.f32 %v372, %v1507
        %v1509 = vpop.f32.mrb[0].mxu0
        %v1510 = vadd.f32 %v376, %v1509
        %1511 = vmatprep.mubr.bf16.mxu0 %v752
        %1512 = vmatmul.mubr.bf16.gmra.mrb[0].mxu0 %v751
        %v1513 = vpop.f32.mrb[0].mxu0
        %v1514 = vadd.f32 %v372, %v1513
        %v1515 = vpop.f32.mrb[0].mxu0
        %v1516 = vadd.f32 %v376, %v1515
        %v1517 = vpop.f32.mrb[0].mxu0
        %v1518 = vadd.f32 %v372, %v1517
        %v1519 = vpop.f32.mrb[0].mxu0
        %v1520 = vadd.f32 %v376, %v1519
        %1521 = vmatprep.mubr.bf16.mxu0 %v758
        %1522 = vmatmul.mubr.bf16.gmra.mrb[0].mxu0 %v757
        %v1523 = vpop.f32.mrb[0].mxu0
        %v1524 = vadd.f32 %v372, %v1523
        %v1525 = vpop.f32.mrb[0].mxu0
        %v1526 = vadd.f32 %v376, %v1525
        %v1527 = vpop.f32.mrb[0].mxu0
        %v1528 = vadd.f32 %v372, %v1527
        %v1529 = vpop.f32.mrb[0].mxu0
        %v1530 = vadd.f32 %v376, %v1529
        %1531 = vdwg.mxu0
        %1532 = vmatprep.subr.bf16.mxu0 %v1180
        %1533 = vmatpush1.bf16.msra.mxu0 %v1179
        %1534 = vmatprep.subr.bf16.mxu0 %v1182
        %1535 = vmatpush1.bf16.msra.mxu0 %v1181
        %1536 = vmatprep.subr.bf16.mxu0 %v1184
        %1537 = vmatpush1.bf16.msra.mxu0 %v1183
        %1538 = vmatprep.subr.bf16.mxu0 %v1186
        %1539 = vmatpush1.bf16.msra.mxu0 %v1185
        %1540 = vmatprep.subr.bf16.mxu0 %v1188
        %1541 = vmatpush1.bf16.msra.mxu0 %v1187
        %1542 = vmatprep.subr.bf16.mxu0 %v1190
        %1543 = vmatpush1.bf16.msra.mxu0 %v1189
        %1544 = vmatprep.subr.bf16.mxu0 %v1192
        %1545 = vmatpush1.bf16.msra.mxu0 %v1191
        %1546 = vmatprep.subr.bf16.mxu0 %v1194
        %1547 = vmatpush1.bf16.msra.mxu0 %v1193
        %1548 = vmatprep.subr.bf16.mxu0 %v1196
        %1549 = vmatpush1.bf16.msra.mxu0 %v1195
        %1550 = vmatprep.subr.bf16.mxu0 %v1198
        %1551 = vmatpush1.bf16.msra.mxu0 %v1197
        %1552 = vmatprep.subr.bf16.mxu0 %v1200
        %1553 = vmatpush1.bf16.msra.mxu0 %v1199
        %1554 = vmatprep.subr.bf16.mxu0 %v1202
        %1555 = vmatpush1.bf16.msra.mxu0 %v1201
        %1556 = vmatprep.subr.bf16.mxu0 %v1204
        %1557 = vmatpush1.bf16.msra.mxu0 %v1203
        %1558 = vmatprep.subr.bf16.mxu0 %v1206
        %1559 = vmatpush1.bf16.msra.mxu0 %v1205
        %1560 = vmatprep.subr.bf16.mxu0 %v1208
        %1561 = vmatpush1.bf16.msra.mxu0 %v1207
        %1562 = vmatprep.subr.bf16.mxu0 %v1210
        %1563 = vmatpush1.bf16.msra.mxu0 %v1209
        %1564 = vmatprep.mubr.bf16.mxu0 %v670
        %1565 = vmatmul.mubr.bf16.gmra.mrb[0].mxu0 %v669
        %v1566 = vpop.f32.mrb[0].mxu0
        %v1567 = vadd.f32 %v1374, %v1566
        %v1568 = vpop.f32.mrb[0].mxu0
        %v1569 = vadd.f32 %v1376, %v1568
        %v1570 = vpop.f32.mrb[0].mxu0
        %v1571 = vadd.f32 %v1378, %v1570
        %v1572 = vpop.f32.mrb[0].mxu0
        %v1573 = vadd.f32 %v1380, %v1572
        %1574 = vmatprep.mubr.bf16.mxu0 %v676
        %1575 = vmatmul.mubr.bf16.gmra.mrb[0].mxu0 %v675
        %v1576 = vpop.f32.mrb[0].mxu0
        %v1577 = vadd.f32 %v1384, %v1576
        %v1578 = vpop.f32.mrb[0].mxu0
        %v1579 = vadd.f32 %v1386, %v1578
        %v1580 = vpop.f32.mrb[0].mxu0
        %v1581 = vadd.f32 %v1388, %v1580
        %v1582 = vpop.f32.mrb[0].mxu0
        %v1583 = vadd.f32 %v1390, %v1582
        %1584 = vmatprep.mubr.bf16.mxu0 %v682
        %1585 = vmatmul.mubr.bf16.gmra.mrb[0].mxu0 %v681
        %v1586 = vpop.f32.mrb[0].mxu0
        %v1587 = vadd.f32 %v1394, %v1586
        %v1588 = vpop.f32.mrb[0].mxu0
        %v1589 = vadd.f32 %v1396, %v1588
        %v1590 = vpop.f32.mrb[0].mxu0
        %v1591 = vadd.f32 %v1398, %v1590
        %v1592 = vpop.f32.mrb[0].mxu0
        %v1593 = vadd.f32 %v1400, %v1592
        %1594 = vmatprep.mubr.bf16.mxu0 %v688
        %1595 = vmatmul.mubr.bf16.gmra.mrb[0].mxu0 %v687
        %v1596 = vpop.f32.mrb[0].mxu0
        %v1597 = vadd.f32 %v1404, %v1596
        %v1598 = vpop.f32.mrb[0].mxu0
        %v1599 = vadd.f32 %v1406, %v1598
        %v1600 = vpop.f32.mrb[0].mxu0
        %v1601 = vadd.f32 %v1408, %v1600
        %v1602 = vpop.f32.mrb[0].mxu0
        %v1603 = vadd.f32 %v1410, %v1602
        %1604 = vmatprep.mubr.bf16.mxu0 %v694
        %1605 = vmatmul.mubr.bf16.gmra.mrb[0].mxu0 %v693
        %v1606 = vpop.f32.mrb[0].mxu0
        %v1607 = vadd.f32 %v1414, %v1606
        %v1608 = vpop.f32.mrb[0].mxu0
        %v1609 = vadd.f32 %v1416, %v1608
        %v1610 = vpop.f32.mrb[0].mxu0
        %v1611 = vadd.f32 %v1418, %v1610
        %v1612 = vpop.f32.mrb[0].mxu0
        %v1613 = vadd.f32 %v1420, %v1612
        %1614 = vmatprep.mubr.bf16.mxu0 %v700
        %1615 = vmatmul.mubr.bf16.gmra.mrb[0].mxu0 %v699
        %v1616 = vpop.f32.mrb[0].mxu0
        %v1617 = vadd.f32 %v1424, %v1616
        %v1618 = vpop.f32.mrb[0].mxu0
        %v1619 = vadd.f32 %v1426, %v1618
        %v1620 = vpop.f32.mrb[0].mxu0
        %v1621 = vadd.f32 %v1428, %v1620
        %v1622 = vpop.f32.mrb[0].mxu0
        %v1623 = vadd.f32 %v1430, %v1622
        %1624 = vmatprep.mubr.bf16.mxu0 %v706
        %1625 = vmatmul.mubr.bf16.gmra.mrb[0].mxu0 %v705
        %v1626 = vpop.f32.mrb[0].mxu0
        %v1627 = vadd.f32 %v1434, %v1626
        %v1628 = vpop.f32.mrb[0].mxu0
        %v1629 = vadd.f32 %v1436, %v1628
        %v1630 = vpop.f32.mrb[0].mxu0
        %v1631 = vadd.f32 %v1438, %v1630
        %v1632 = vpop.f32.mrb[0].mxu0
        %v1633 = vadd.f32 %v1440, %v1632
        %1634 = vmatprep.mubr.bf16.mxu0 %v712
        %1635 = vmatmul.mubr.bf16.gmra.mrb[0].mxu0 %v711
        %v1636 = vpop.f32.mrb[0].mxu0
        %v1637 = vadd.f32 %v1444, %v1636
        %v1638 = vpop.f32.mrb[0].mxu0
        %v1639 = vadd.f32 %v1446, %v1638
        %v1640 = vpop.f32.mrb[0].mxu0
        %v1641 = vadd.f32 %v1448, %v1640
        %v1642 = vpop.f32.mrb[0].mxu0
        %v1643 = vadd.f32 %v1450, %v1642
        %1644 = vmatprep.mubr.bf16.mxu0 %v718
        %1645 = vmatmul.mubr.bf16.gmra.mrb[0].mxu0 %v717
        %v1646 = vpop.f32.mrb[0].mxu0
        %v1647 = vadd.f32 %v1454, %v1646
        %v1648 = vpop.f32.mrb[0].mxu0
        %v1649 = vadd.f32 %v1456, %v1648
        %v1650 = vpop.f32.mrb[0].mxu0
        %v1651 = vadd.f32 %v1458, %v1650
        %v1652 = vpop.f32.mrb[0].mxu0
        %v1653 = vadd.f32 %v1460, %v1652
        %1654 = vmatprep.mubr.bf16.mxu0 %v724
        %1655 = vmatmul.mubr.bf16.gmra.mrb[0].mxu0 %v723
        %v1656 = vpop.f32.mrb[0].mxu0
        %v1657 = vadd.f32 %v1464, %v1656
        %v1658 = vpop.f32.mrb[0].mxu0
        %v1659 = vadd.f32 %v1466, %v1658
        %v1660 = vpop.f32.mrb[0].mxu0
        %v1661 = vadd.f32 %v1468, %v1660
        %v1662 = vpop.f32.mrb[0].mxu0
        %v1663 = vadd.f32 %v1470, %v1662
        %1664 = vmatprep.mubr.bf16.mxu0 %v730
        %1665 = vmatmul.mubr.bf16.gmra.mrb[0].mxu0 %v729
        %v1666 = vpop.f32.mrb[0].mxu0
        %v1667 = vadd.f32 %v1474, %v1666
        %v1668 = vpop.f32.mrb[0].mxu0
        %v1669 = vadd.f32 %v1476, %v1668
        %v1670 = vpop.f32.mrb[0].mxu0
        %v1671 = vadd.f32 %v1478, %v1670
        %v1672 = vpop.f32.mrb[0].mxu0
        %v1673 = vadd.f32 %v1480, %v1672
        %1674 = vmatprep.mubr.bf16.mxu0 %v736
        %1675 = vmatmul.mubr.bf16.gmra.mrb[0].mxu0 %v735
        %v1676 = vpop.f32.mrb[0].mxu0
        %v1677 = vadd.f32 %v1484, %v1676
        %v1678 = vpop.f32.mrb[0].mxu0
        %v1679 = vadd.f32 %v1486, %v1678
        %v1680 = vpop.f32.mrb[0].mxu0
        %v1681 = vadd.f32 %v1488, %v1680
        %v1682 = vpop.f32.mrb[0].mxu0
        %v1683 = vadd.f32 %v1490, %v1682
        %1684 = vmatprep.mubr.bf16.mxu0 %v742
        %1685 = vmatmul.mubr.bf16.gmra.mrb[0].mxu0 %v741
        %v1686 = vpop.f32.mrb[0].mxu0
        %v1687 = vadd.f32 %v1494, %v1686
        %v1688 = vpop.f32.mrb[0].mxu0
        %v1689 = vadd.f32 %v1496, %v1688
        %v1690 = vpop.f32.mrb[0].mxu0
        %v1691 = vadd.f32 %v1498, %v1690
        %v1692 = vpop.f32.mrb[0].mxu0
        %v1693 = vadd.f32 %v1500, %v1692
        %1694 = vmatprep.mubr.bf16.mxu0 %v748
        %1695 = vmatmul.mubr.bf16.gmra.mrb[0].mxu0 %v747
        %v1696 = vpop.f32.mrb[0].mxu0
        %v1697 = vadd.f32 %v1504, %v1696
        %v1698 = vpop.f32.mrb[0].mxu0
        %v1699 = vadd.f32 %v1506, %v1698
        %v1700 = vpop.f32.mrb[0].mxu0
        %v1701 = vadd.f32 %v1508, %v1700
        %v1702 = vpop.f32.mrb[0].mxu0
        %v1703 = vadd.f32 %v1510, %v1702
        %1704 = vmatprep.mubr.bf16.mxu0 %v754
        %1705 = vmatmul.mubr.bf16.gmra.mrb[0].mxu0 %v753
        %v1706 = vpop.f32.mrb[0].mxu0
        %v1707 = vadd.f32 %v1514, %v1706
        %v1708 = vpop.f32.mrb[0].mxu0
        %v1709 = vadd.f32 %v1516, %v1708
        %v1710 = vpop.f32.mrb[0].mxu0
        %v1711 = vadd.f32 %v1518, %v1710
        %v1712 = vpop.f32.mrb[0].mxu0
        %v1713 = vadd.f32 %v1520, %v1712
        %1714 = vmatprep.mubr.bf16.mxu0 %v760
        %1715 = vmatmul.mubr.bf16.gmra.mrb[0].mxu0 %v759
        %v1716 = vpop.f32.mrb[0].mxu0
        %v1717 = vadd.f32 %v1524, %v1716
        %v1718 = vpop.f32.mrb[0].mxu0
        %v1719 = vadd.f32 %v1526, %v1718
        %v1720 = vpop.f32.mrb[0].mxu0
        %v1721 = vadd.f32 %v1528, %v1720
        %v1722 = vpop.f32.mrb[0].mxu0
        %v1723 = vadd.f32 %v1530, %v1722
        %1724 = vdwg.mxu0
        %1725 = vmatprep.subr.bf16.mxu0 %v1212
        %1726 = vmatpush1.bf16.msra.mxu0 %v1211
        %1727 = vmatprep.subr.bf16.mxu0 %v1214
        %1728 = vmatpush1.bf16.msra.mxu0 %v1213
        %1729 = vmatprep.subr.bf16.mxu0 %v1216
        %1730 = vmatpush1.bf16.msra.mxu0 %v1215
        %1731 = vmatprep.subr.bf16.mxu0 %v1218
        %1732 = vmatpush1.bf16.msra.mxu0 %v1217
        %1733 = vmatprep.subr.bf16.mxu0 %v1220
        %1734 = vmatpush1.bf16.msra.mxu0 %v1219
        %1735 = vmatprep.subr.bf16.mxu0 %v1222
        %1736 = vmatpush1.bf16.msra.mxu0 %v1221
        %1737 = vmatprep.subr.bf16.mxu0 %v1224
        %1738 = vmatpush1.bf16.msra.mxu0 %v1223
        %1739 = vmatprep.subr.bf16.mxu0 %v1226
        %1740 = vmatpush1.bf16.msra.mxu0 %v1225
        %1741 = vmatprep.subr.bf16.mxu0 %v1228
        %1742 = vmatpush1.bf16.msra.mxu0 %v1227
        %1743 = vmatprep.subr.bf16.mxu0 %v1230
        %1744 = vmatpush1.bf16.msra.mxu0 %v1229
        %1745 = vmatprep.subr.bf16.mxu0 %v1232
        %1746 = vmatpush1.bf16.msra.mxu0 %v1231
        %1747 = vmatprep.subr.bf16.mxu0 %v1234
        %1748 = vmatpush1.bf16.msra.mxu0 %v1233
        %1749 = vmatprep.subr.bf16.mxu0 %v1236
        %1750 = vmatpush1.bf16.msra.mxu0 %v1235
        %1751 = vmatprep.subr.bf16.mxu0 %v1238
        %1752 = vmatpush1.bf16.msra.mxu0 %v1237
        %1753 = vmatprep.subr.bf16.mxu0 %v1240
        %1754 = vmatpush1.bf16.msra.mxu0 %v1239
        %1755 = vmatprep.subr.bf16.mxu0 %v1242
        %1756 = vmatpush1.bf16.msra.mxu0 %v1241
        %1757 = vmatprep.mubr.bf16.mxu0 %v672
        %1758 = vmatmul.mubr.bf16.gmra.mrb[0].mxu0 %v671
        %v1759 = vpop.f32.mrb[0].mxu0
        %v1760 = vadd.f32 %v1567, %v1759
        %v1761 = vpop.f32.mrb[0].mxu0
        %v1762 = vadd.f32 %v1569, %v1761
        %v1763 = vpop.f32.mrb[0].mxu0
        %v1764 = vadd.f32 %v1571, %v1763
        %v1765 = vpop.f32.mrb[0].mxu0
        %v1766 = vadd.f32 %v1573, %v1765
        %1767 = vmatprep.mubr.bf16.mxu0 %v678
        %1768 = vmatmul.mubr.bf16.gmra.mrb[0].mxu0 %v677
        %v1769 = vpop.f32.mrb[0].mxu0
        %v1770 = vadd.f32 %v1577, %v1769
        %v1771 = vpop.f32.mrb[0].mxu0
        %v1772 = vadd.f32 %v1579, %v1771
        %v1773 = vpop.f32.mrb[0].mxu0
        %v1774 = vadd.f32 %v1581, %v1773
        %v1775 = vpop.f32.mrb[0].mxu0
        %v1776 = vadd.f32 %v1583, %v1775
        %1777 = vmatprep.mubr.bf16.mxu0 %v684
        %1778 = vmatmul.mubr.bf16.gmra.mrb[0].mxu0 %v683
        %v1779 = vpop.f32.mrb[0].mxu0
        %v1780 = vadd.f32 %v1587, %v1779
        %v1781 = vpop.f32.mrb[0].mxu0
        %v1782 = vadd.f32 %v1589, %v1781
        %v1783 = vpop.f32.mrb[0].mxu0
        %v1784 = vadd.f32 %v1591, %v1783
        %v1785 = vpop.f32.mrb[0].mxu0
        %v1786 = vadd.f32 %v1593, %v1785
        %1787 = vmatprep.mubr.bf16.mxu0 %v690
        %1788 = vmatmul.mubr.bf16.gmra.mrb[0].mxu0 %v689
        %v1789 = vpop.f32.mrb[0].mxu0
        %v1790 = vadd.f32 %v1597, %v1789
        %v1791 = vpop.f32.mrb[0].mxu0
        %v1792 = vadd.f32 %v1599, %v1791
        %v1793 = vpop.f32.mrb[0].mxu0
        %v1794 = vadd.f32 %v1601, %v1793
        %v1795 = vpop.f32.mrb[0].mxu0
        %v1796 = vadd.f32 %v1603, %v1795
        %1797 = vmatprep.mubr.bf16.mxu0 %v696
        %1798 = vmatmul.mubr.bf16.gmra.mrb[0].mxu0 %v695
        %v1799 = vpop.f32.mrb[0].mxu0
        %v1800 = vadd.f32 %v1607, %v1799
        %v1801 = vpop.f32.mrb[0].mxu0
        %v1802 = vadd.f32 %v1609, %v1801
        %v1803 = vpop.f32.mrb[0].mxu0
        %v1804 = vadd.f32 %v1611, %v1803
        %v1805 = vpop.f32.mrb[0].mxu0
        %v1806 = vadd.f32 %v1613, %v1805
        %1807 = vmatprep.mubr.bf16.mxu0 %v702
        %1808 = vmatmul.mubr.bf16.gmra.mrb[0].mxu0 %v701
        %v1809 = vpop.f32.mrb[0].mxu0
        %v1810 = vadd.f32 %v1617, %v1809
        %v1811 = vpop.f32.mrb[0].mxu0
        %v1812 = vadd.f32 %v1619, %v1811
        %v1813 = vpop.f32.mrb[0].mxu0
        %v1814 = vadd.f32 %v1621, %v1813
        %v1815 = vpop.f32.mrb[0].mxu0
        %v1816 = vadd.f32 %v1623, %v1815
        %1817 = vmatprep.mubr.bf16.mxu0 %v708
        %1818 = vmatmul.mubr.bf16.gmra.mrb[0].mxu0 %v707
        %v1819 = vpop.f32.mrb[0].mxu0
        %v1820 = vadd.f32 %v1627, %v1819
        %v1821 = vpop.f32.mrb[0].mxu0
        %v1822 = vadd.f32 %v1629, %v1821
        %v1823 = vpop.f32.mrb[0].mxu0
        %v1824 = vadd.f32 %v1631, %v1823
        %v1825 = vpop.f32.mrb[0].mxu0
        %v1826 = vadd.f32 %v1633, %v1825
        %1827 = vmatprep.mubr.bf16.mxu0 %v714
        %1828 = vmatmul.mubr.bf16.gmra.mrb[0].mxu0 %v713
        %v1829 = vpop.f32.mrb[0].mxu0
        %v1830 = vadd.f32 %v1637, %v1829
        %v1831 = vpop.f32.mrb[0].mxu0
        %v1832 = vadd.f32 %v1639, %v1831
        %v1833 = vpop.f32.mrb[0].mxu0
        %v1834 = vadd.f32 %v1641, %v1833
        %v1835 = vpop.f32.mrb[0].mxu0
        %v1836 = vadd.f32 %v1643, %v1835
        %1837 = vmatprep.mubr.bf16.mxu0 %v720
        %1838 = vmatmul.mubr.bf16.gmra.mrb[0].mxu0 %v719
        %v1839 = vpop.f32.mrb[0].mxu0
        %v1840 = vadd.f32 %v1647, %v1839
        %v1841 = vpop.f32.mrb[0].mxu0
        %v1842 = vadd.f32 %v1649, %v1841
        %v1843 = vpop.f32.mrb[0].mxu0
        %v1844 = vadd.f32 %v1651, %v1843
        %v1845 = vpop.f32.mrb[0].mxu0
        %v1846 = vadd.f32 %v1653, %v1845
        %1847 = vmatprep.mubr.bf16.mxu0 %v726
        %1848 = vmatmul.mubr.bf16.gmra.mrb[0].mxu0 %v725
        %v1849 = vpop.f32.mrb[0].mxu0
        %v1850 = vadd.f32 %v1657, %v1849
        %v1851 = vpop.f32.mrb[0].mxu0
        %v1852 = vadd.f32 %v1659, %v1851
        %v1853 = vpop.f32.mrb[0].mxu0
        %v1854 = vadd.f32 %v1661, %v1853
        %v1855 = vpop.f32.mrb[0].mxu0
        %v1856 = vadd.f32 %v1663, %v1855
        %1857 = vmatprep.mubr.bf16.mxu0 %v732
        %1858 = vmatmul.mubr.bf16.gmra.mrb[0].mxu0 %v731
        %v1859 = vpop.f32.mrb[0].mxu0
        %v1860 = vadd.f32 %v1667, %v1859
        %v1861 = vpop.f32.mrb[0].mxu0
        %v1862 = vadd.f32 %v1669, %v1861
        %v1863 = vpop.f32.mrb[0].mxu0
        %v1864 = vadd.f32 %v1671, %v1863
        %v1865 = vpop.f32.mrb[0].mxu0
        %v1866 = vadd.f32 %v1673, %v1865
        %1867 = vmatprep.mubr.bf16.mxu0 %v738
        %1868 = vmatmul.mubr.bf16.gmra.mrb[0].mxu0 %v737
        %v1869 = vpop.f32.mrb[0].mxu0
        %v1870 = vadd.f32 %v1677, %v1869
        %v1871 = vpop.f32.mrb[0].mxu0
        %v1872 = vadd.f32 %v1679, %v1871
        %v1873 = vpop.f32.mrb[0].mxu0
        %v1874 = vadd.f32 %v1681, %v1873
        %v1875 = vpop.f32.mrb[0].mxu0
        %v1876 = vadd.f32 %v1683, %v1875
        %1877 = vmatprep.mubr.bf16.mxu0 %v744
        %1878 = vmatmul.mubr.bf16.gmra.mrb[0].mxu0 %v743
        %v1879 = vpop.f32.mrb[0].mxu0
        %v1880 = vadd.f32 %v1687, %v1879
        %v1881 = vpop.f32.mrb[0].mxu0
        %v1882 = vadd.f32 %v1689, %v1881
        %v1883 = vpop.f32.mrb[0].mxu0
        %v1884 = vadd.f32 %v1691, %v1883
        %v1885 = vpop.f32.mrb[0].mxu0
        %v1886 = vadd.f32 %v1693, %v1885
        %1887 = vmatprep.mubr.bf16.mxu0 %v750
        %1888 = vmatmul.mubr.bf16.gmra.mrb[0].mxu0 %v749
        %v1889 = vpop.f32.mrb[0].mxu0
        %v1890 = vadd.f32 %v1697, %v1889
        %v1891 = vpop.f32.mrb[0].mxu0
        %v1892 = vadd.f32 %v1699, %v1891
        %v1893 = vpop.f32.mrb[0].mxu0
        %v1894 = vadd.f32 %v1701, %v1893
        %v1895 = vpop.f32.mrb[0].mxu0
        %v1896 = vadd.f32 %v1703, %v1895
        %1897 = vmatprep.mubr.bf16.mxu0 %v756
        %1898 = vmatmul.mubr.bf16.gmra.mrb[0].mxu0 %v755
        %v1899 = vpop.f32.mrb[0].mxu0
        %v1900 = vadd.f32 %v1707, %v1899
        %v1901 = vpop.f32.mrb[0].mxu0
        %v1902 = vadd.f32 %v1709, %v1901
        %v1903 = vpop.f32.mrb[0].mxu0
        %v1904 = vadd.f32 %v1711, %v1903
        %v1905 = vpop.f32.mrb[0].mxu0
        %v1906 = vadd.f32 %v1713, %v1905
        %1907 = vmatprep.mubr.bf16.mxu0 %v762
        %1908 = vmatmul.mubr.bf16.gmra.mrb[0].mxu0 %v761
        %v1909 = vpop.f32.mrb[0].mxu0
        %v1910 = vadd.f32 %v1717, %v1909
        %v1911 = vpop.f32.mrb[0].mxu0
        %v1912 = vadd.f32 %v1719, %v1911
        %v1913 = vpop.f32.mrb[0].mxu0
        %v1914 = vadd.f32 %v1721, %v1913
        %v1915 = vpop.f32.mrb[0].mxu0
        %v1916 = vadd.f32 %v1723, %v1915
        %1917 = vdwg.mxu0
        %1918 = vst [vmem:[%s166] sm:$0xff] %v1760
        %vm1919 = vcmask 523264
        %1920 = vst.msk [vmem:[%s166 + $0x8] sm:$0xff] %vm1919, %v1762
        %1921 = vst [vmem:[%s166 + $0x10] sm:$0xff] %v1764
        %1922 = vst.msk [vmem:[%s166 + $0x18] sm:$0xff] %vm1919, %v1766
        %1923 = vst [vmem:[%s166 + $0x20] sm:$0xff] %v1770
        %1924 = vst.msk [vmem:[%s166 + $0x28] sm:$0xff] %vm1919, %v1772
        %1925 = vst [vmem:[%s166 + $0x30] sm:$0xff] %v1774
        %1926 = vst.msk [vmem:[%s166 + $0x38] sm:$0xff] %vm1919, %v1776
        %1927 = vst [vmem:[%s166 + $0x40] sm:$0xff] %v1780
        %1928 = vst.msk [vmem:[%s166 + $0x48] sm:$0xff] %vm1919, %v1782
        %1929 = vst [vmem:[%s166 + $0x50] sm:$0xff] %v1784
        %1930 = vst.msk [vmem:[%s166 + $0x58] sm:$0xff] %vm1919, %v1786
        %1931 = vst [vmem:[%s166 + $0x60] sm:$0xff] %v1790
        %1932 = vst.msk [vmem:[%s166 + $0x68] sm:$0xff] %vm1919, %v1792
        %1933 = vst [vmem:[%s166 + $0x70] sm:$0xff] %v1794
        %1934 = vst.msk [vmem:[%s166 + $0x78] sm:$0xff] %vm1919, %v1796
        %1935 = vst [vmem:[%s166 + $0x80] sm:$0xff] %v1800
        %1936 = vst.msk [vmem:[%s166 + $0x88] sm:$0xff] %vm1919, %v1802
        %1937 = vst [vmem:[%s166 + $0x90] sm:$0xff] %v1804
        %1938 = vst.msk [vmem:[%s166 + $0x98] sm:$0xff] %vm1919, %v1806
        %1939 = vst [vmem:[%s166 + $0xa0] sm:$0xff] %v1810
        %1940 = vst.msk [vmem:[%s166 + $0xa8] sm:$0xff] %vm1919, %v1812
        %1941 = vst [vmem:[%s166 + $0xb0] sm:$0xff] %v1814
        %1942 = vst.msk [vmem:[%s166 + $0xb8] sm:$0xff] %vm1919, %v1816
        %1943 = vst [vmem:[%s166 + $0xc0] sm:$0xff] %v1820
        %1944 = vst.msk [vmem:[%s166 + $0xc8] sm:$0xff] %vm1919, %v1822
        %1945 = vst [vmem:[%s166 + $0xd0] sm:$0xff] %v1824
        %1946 = vst.msk [vmem:[%s166 + $0xd8] sm:$0xff] %vm1919, %v1826
        %1947 = vst [vmem:[%s166 + $0xe0] sm:$0xff] %v1830
        %1948 = vst.msk [vmem:[%s166 + $0xe8] sm:$0xff] %vm1919, %v1832
        %1949 = vst [vmem:[%s166 + $0xf0] sm:$0xff] %v1834
        %1950 = vst.msk [vmem:[%s166 + $0xf8] sm:$0xff] %vm1919, %v1836
        %1951 = vst [vmem:[%s166 + $0x100] sm:$0xff] %v1840
        %1952 = vst.msk [vmem:[%s166 + $0x108] sm:$0xff] %vm1919, %v1842
        %1953 = vst [vmem:[%s166 + $0x110] sm:$0xff] %v1844
        %1954 = vst.msk [vmem:[%s166 + $0x118] sm:$0xff] %vm1919, %v1846
        %1955 = vst [vmem:[%s166 + $0x120] sm:$0xff] %v1850
        %1956 = vst.msk [vmem:[%s166 + $0x128] sm:$0xff] %vm1919, %v1852
        %1957 = vst [vmem:[%s166 + $0x130] sm:$0xff] %v1854
        %1958 = vst.msk [vmem:[%s166 + $0x138] sm:$0xff] %vm1919, %v1856
        %1959 = vst [vmem:[%s166 + $0x140] sm:$0xff] %v1860
        %1960 = vst.msk [vmem:[%s166 + $0x148] sm:$0xff] %vm1919, %v1862
        %1961 = vst [vmem:[%s166 + $0x150] sm:$0xff] %v1864
        %1962 = vst.msk [vmem:[%s166 + $0x158] sm:$0xff] %vm1919, %v1866
        %1963 = vst [vmem:[%s166 + $0x160] sm:$0xff] %v1870
        %1964 = vst.msk [vmem:[%s166 + $0x168] sm:$0xff] %vm1919, %v1872
        %1965 = vst [vmem:[%s166 + $0x170] sm:$0xff] %v1874
        %1966 = vst.msk [vmem:[%s166 + $0x178] sm:$0xff] %vm1919, %v1876
        %1967 = vst [vmem:[%s166 + $0x180] sm:$0xff] %v1880
        %1968 = vst.msk [vmem:[%s166 + $0x188] sm:$0xff] %vm1919, %v1882
        %1969 = vst [vmem:[%s166 + $0x190] sm:$0xff] %v1884
        %1970 = vst.msk [vmem:[%s166 + $0x198] sm:$0xff] %vm1919, %v1886
        %1971 = vst [vmem:[%s166 + $0x1a0] sm:$0xff] %v1890
        %1972 = vst.msk [vmem:[%s166 + $0x1a8] sm:$0xff] %vm1919, %v1892
        %1973 = vst [vmem:[%s166 + $0x1b0] sm:$0xff] %v1894
        %1974 = vst.msk [vmem:[%s166 + $0x1b8] sm:$0xff] %vm1919, %v1896
        %1975 = vst [vmem:[%s166 + $0x1c0] sm:$0xff] %v1900
        %1976 = vst.msk [vmem:[%s166 + $0x1c8] sm:$0xff] %vm1919, %v1902
        %1977 = vst [vmem:[%s166 + $0x1d0] sm:$0xff] %v1904
        %1978 = vst.msk [vmem:[%s166 + $0x1d8] sm:$0xff] %vm1919, %v1906
        %1979 = vst [vmem:[%s166 + $0x1e0] sm:$0xff] %v1910
        %1980 = vst.msk [vmem:[%s166 + $0x1e8] sm:$0xff] %vm1919, %v1912
        %1981 = vst [vmem:[%s166 + $0x1f0] sm:$0xff] %v1914
        %1982 = vst.msk [vmem:[%s166 + $0x1f8] sm:$0xff] %vm1919, %v1916
        %s1983 = sand.u32 %s93, 1
        %s1984 = scalar_lea.sflag [#allocation3], %s1983
        %s1985 = sand.u32 %s93, 1
        %s1986 = smul.addr %s1985, 512
        %s1987 = scalar_lea.vmem [#allocation2], %s1986
        // Predicated region
        $region33: #{patch_embed_2pt5d.1} parent=31 // pred_check
          %p1988 = pneg %p103
        $region34: #{patch_embed_2pt5d.1} parent=31 // pred_check_branch
          %1990 = sbr.rel (%p1988) target = $region36
        $region35: #{patch_embed_2pt5d.1} parent=31 // pred_region
          %s1991 = smul.u32 32, %s17
          %s1993 = ssub.s32 8192, 8192
          %1994 = vsyncadd %s1984, %s1993
          %s1995 = smul.addr %s1991, 2
          %s1996 = smul.addr %s1995, 128
          %s1997 = scalar_lea.hbm %s3, %s1996
          %s1998 = sshll.u32 %s1987, 4
          %s1999 = int_to_ptr.vmem [resolvable:$true] %s1998
          %2004 = dma.vmem_to_hbm [thread:$0]  %s1999, 8192, %s1997, %s1984, 256, 256, 16
        $region36: #{patch_embed_2pt5d.1} parent=31 // pred_fallthru
          _
      $region32: #{patch_embed_2pt5d.1} parent=5 // pred_fallthru
        _
      %p2005 = scmp.le.s32.totalorder 2, %s12
      // Predicated region
      $region37: #{patch_embed_2pt5d.1} parent=5 // pred_check
        %p2006 = pneg %p2005
      $region38: #{patch_embed_2pt5d.1} parent=5 // pred_check_branch
        %2008 = sbr.rel (%p2006) target = $region40
      $region39: #{patch_embed_2pt5d.1} parent=5 // pred_region
        %s2009 = ssub.s32 %s12, 2
        // Predicated region
        $region41: #{patch_embed_2pt5d.1} parent=39 // pred_check
          %p2010 = pneg %p109
        $region42: #{patch_embed_2pt5d.1} parent=39 // pred_check_branch
          %2012 = sbr.rel (%p2010) target = $region44
        $region43: #{patch_embed_2pt5d.1} parent=39 // pred_region
          %s2013 = sand.u32 %s94, 1
          %s2014 = scalar_lea.sflag [#allocation3], %s2013
          %s2015 = sand.u32 %s94, 1
          %s2016 = smul.addr %s2015, 512
          %s2017 = scalar_lea.vmem [#allocation2], %s2016
          %2018 = dma.done %s2014, 8192
        $region44: #{patch_embed_2pt5d.1} parent=39 // pred_fallthru
          _
      $region40: #{patch_embed_2pt5d.1} parent=5 // pred_fallthru
        _
    $region6: #{patch_embed_2pt5d.1} parent=1 // loop_footer
      %s16 = sadd.s32 1, %s12
    $region7: #{patch_embed_2pt5d.1} parent=1 // loop_footer_branch
      %11 = sbr.rel target = $region3
    $region8: #{patch_embed_2pt5d.1} parent=1 // loop_exit
      _
    %2019 = vsyncpa [#allocation3], 1
    %s2020 = scalar_lea.sflag [#allocation3], 1
    %2021 = vsyncpa %s2020, 1

</llo_original>
